<compile_context>
chip_gen: v6e
topology: v6e:2x2x1
jax: 0.10.0
libtpu: 0.0.40
codegen_flags: <defaults>
</compile_context>

<pallas_src>
import functools

import jax
import jax.numpy as jnp
from jax.experimental import pallas as pl
from jax.experimental.pallas import tpu as pltpu


# ----------------------------------------------------------------------------
# Fused kernel: conv3x3 + bias + ReLU + Linear + Softmax (one sample per step)
# ----------------------------------------------------------------------------
def fused_policy_kernel(x_ref, w1_ref, b1_ref, w2_ref, b2_ref, o_ref, x9_ref,
                        *, img_h, img_w):
    # x_ref : (1, Cin, P2)    zero-padded image, channel-major, P2=(H+2)*(W+2)
    # w1_ref: (Cout, 9*Cin)   conv weight, column = (ky*3+kx)*Cin + cin
    # b1_ref: (Cout, 1)
    # w2_ref: (Cout, L, O)    FC weight with zero cols at padded pixel slots
    # b2_ref: (1, O)
    # o_ref : (1, 1, O)       softmax probabilities for this sample
    # x9_ref: (9*Cin, L)      VMEM scratch: im2col slab
    Wp = img_w + 2
    L = img_h * Wp - 2
    Cin = x_ref.shape[1]
    Cout = w1_ref.shape[0]

    # --- im2col: 9 static shifted slices stacked along the contraction axis --
    for tap in range(9):
        dy, dx = tap // 3, tap % 3
        start = dy * Wp + dx                      # static python int
        x9_ref[pl.ds(tap * Cin, Cin), :] = x_ref[0, :, pl.ds(start, L)]

    # --- conv as ONE MXU matmul, + bias, ReLU (channel-major, lane-dense) ----
    h = jnp.dot(w1_ref[...], x9_ref[...], preferred_element_type=jnp.float32)
    h = jnp.maximum(h + b1_ref[...], 0.0)         # (Cout, L)

    # --- Linear: contract over (channel, pixel) ------------------------------
    # Unrolled per-channel 2D dots (K = L = 286 each) keep everything as plain
    # 2D matmuls and avoid an in-kernel (Cout, L) -> (1, Cout*L) relayout.
    logits = b2_ref[...].astype(jnp.float32)      # (1, O)
    for c in range(Cout):
        logits = logits + jnp.dot(h[c:c + 1, :], w2_ref[c],
                                  preferred_element_type=jnp.float32)

    # --- softmax(dim=-1) ------------------------------------------------------
    m = jnp.max(logits, axis=-1, keepdims=True)
    e = jnp.exp(logits - m)
    denom = jnp.sum(e, axis=-1, keepdims=True)
    o_ref[0] = (e * pl.reciprocal(denom, approx=False)).astype(o_ref.dtype)


# ----------------------------------------------------------------------------
# Wrapper (layout plumbing in plain JAX, one fused pallas_call)
# ----------------------------------------------------------------------------
def conv_policy_forward(x, w1, b1, w2, b2):
    """x: (N, Cin, H, W); w1: (Cout, Cin, 3, 3); b1: (Cout,);
    w2: (O, Cout*H*W); b2: (O,).  Returns (N, O) softmax probs."""
    N, Cin, H, W = x.shape
    Cout = w1.shape[0]
    O = w2.shape[0]
    Wp = W + 2
    P2 = (H + 2) * Wp
    L = H * Wp - 2                                 # conv-output slab length

    # Zero-pad spatially by 1 (the conv's padding=1), flatten padded pixels.
    x_pad = jnp.pad(x, ((0, 0), (0, 0), (1, 1), (1, 1)))      # (N, Cin, H+2, W+2)
    x_cp = x_pad.reshape(N, Cin, P2)

    # Conv weight -> (Cout, 9*Cin) with column = tap*Cin + cin, tap = ky*3+kx.
    w1_k = jnp.transpose(w1, (0, 2, 3, 1)).reshape(Cout, 9 * Cin)
    b1_k = b1.reshape(Cout, 1)

    # FC weight: PyTorch flatten index is c*H*W + h*W + w.  The kernel's slab
    # index is l = h*(W+2) + w, so insert zero columns at w=W, W+1 of every row
    # (junk conv outputs there then contribute exactly zero).
    w2_r = w2.reshape(O, Cout, H, W)
    w2_p = jnp.pad(w2_r, ((0, 0), (0, 0), (0, 0), (0, 2)))     # (O, Cout, H, W+2)
    w2_k = jnp.transpose(w2_p.reshape(O, Cout, H * Wp)[:, :, :L], (1, 2, 0))
    b2_k = b2.reshape(1, O)

    out = pl.pallas_call(
        functools.partial(fused_policy_kernel, img_h=H, img_w=W),
        out_shape=jax.ShapeDtypeStruct((N, 1, O), jnp.float32),
        grid=(N,),
        in_specs=[
            pl.BlockSpec((1, Cin, P2), lambda n: (n, 0, 0)),   # per-sample image
            pl.BlockSpec((Cout, 9 * Cin), lambda n: (0, 0)),   # resident weights
            pl.BlockSpec((Cout, 1), lambda n: (0, 0)),
            pl.BlockSpec((Cout, L, O), lambda n: (0, 0, 0)),
            pl.BlockSpec((1, O), lambda n: (0, 0)),
        ],
        out_specs=pl.BlockSpec((1, 1, O), lambda n: (n, 0, 0)),
        scratch_shapes=[pltpu.VMEM((9 * Cin, L), jnp.float32)],
        compiler_params=pltpu.CompilerParams(dimension_semantics=("parallel",)),
    )(x_cp, w1_k, b1_k, w2_k, b2_k)
    return out.reshape(N, O)


# ----------------------------------------------------------------------------
# Pure-JAX reference (for correctness check)
# ----------------------------------------------------------------------------
def reference_forward(x, w1, b1, w2, b2):
    y = jax.lax.conv_general_dilated(
        x, w1, window_strides=(1, 1), padding="SAME",
        dimension_numbers=("NCHW", "OIHW", "NCHW"),
    )
    y = jax.nn.relu(y + b1[None, :, None, None])
    y = y.reshape(x.shape[0], -1)
    logits = y @ w2.T + b2
    return jax.nn.softmax(logits, axis=-1)


if __name__ == "__main__":
    # Small shapes consistent with the module's forward.
    batch, in_channels, in_h, in_w = 2, 4, 16, 16
    hidden_channels, output_dim = 8, 10

    key = jax.random.PRNGKey(0)
    k1, k2, k3, k4, k5 = jax.random.split(key, 5)
    w1 = jax.random.normal(k1, (hidden_channels, in_channels, 3, 3), jnp.float32) * 0.1
    b1 = jax.random.normal(k2, (hidden_channels,), jnp.float32) * 0.1
    w2 = jax.random.normal(
        k3, (output_dim, hidden_channels * in_h * in_w), jnp.float32
    ) * 0.02
    b2 = jax.random.normal(k4, (output_dim,), jnp.float32) * 0.02
    x = jax.random.normal(k5, (batch, in_channels, in_h, in_w), jnp.float32)

    out = conv_policy_forward(x, w1, b1, w2, b2)
    out = jax.block_until_ready(out)

    ref = jax.block_until_ready(reference_forward(x, w1, b1, w2, b2))
    assert out.shape == (batch, output_dim)
    assert jnp.allclose(out, ref, rtol=1e-4, atol=1e-4), (
        f"max abs err {jnp.max(jnp.abs(out - ref))}"
    )

    print("KERNEL_OK")
</pallas_src>

<mosaic_0001>
module attributes {stable_mosaic.version = 11 : i64} {
  func.func @fused_policy_kernel(%arg0: i32, %arg1: memref<1x4x324xf32, #tpu.memory_space<vmem>>, %arg2: memref<8x36xf32, #tpu.memory_space<vmem>>, %arg3: memref<8x1xf32, #tpu.memory_space<vmem>>, %arg4: memref<8x286x10xf32, #tpu.memory_space<vmem>>, %arg5: memref<1x10xf32, #tpu.memory_space<vmem>>, %arg6: memref<1x1x10xf32, #tpu.memory_space<vmem>>, %arg7: memref<36x286xf32, #tpu.memory_space<vmem>>) attributes {dimension_semantics = [#tpu.dimension_semantics<parallel>], iteration_bounds = array<i64: 2>, scalar_prefetch = 0 : i64, scratch_operands = 1 : i64, tpu.core_type = #tpu.core_type<tc>, window_params = [{transform_indices = @transform_0, window_bounds = array<i64: 1, 4, 324>}, {pipeline_mode = #tpu.pipeline_mode<synchronous>, transform_indices = @transform_1, window_bounds = array<i64: 8, 36>}, {pipeline_mode = #tpu.pipeline_mode<synchronous>, transform_indices = @transform_2, window_bounds = array<i64: 8, 1>}, {pipeline_mode = #tpu.pipeline_mode<synchronous>, transform_indices = @transform_3, window_bounds = array<i64: 8, 286, 10>}, {pipeline_mode = #tpu.pipeline_mode<synchronous>, transform_indices = @transform_4, window_bounds = array<i64: 1, 10>}, {transform_indices = @transform_5, window_bounds = array<i64: 1, 1, 10>}]} {
    %c0 = arith.constant 0 : index
    %c0_0 = arith.constant 0 : index
    %c0_1 = arith.constant 0 : index
    %0 = vector.load %arg1[%c0, %c0_0, %c0_1] : memref<1x4x324xf32, #tpu.memory_space<vmem>>, vector<1x4x286xf32>
    %1 = vector.shape_cast %0 : vector<1x4x286xf32> to vector<4x286xf32>
    %c0_2 = arith.constant 0 : index
    %c0_3 = arith.constant 0 : index
    %2 = vector.load %arg7[%c0_2, %c0_3] : memref<36x286xf32, #tpu.memory_space<vmem>>, vector<4x286xf32>
    tpu.vector_store %arg7[%c0_2, %c0_3], %1 {strides = array<i32>} : memref<36x286xf32, #tpu.memory_space<vmem>>, vector<4x286xf32>,
    %c0_4 = arith.constant 0 : index
    %c0_5 = arith.constant 0 : index
    %c1 = arith.constant 1 : index
    %3 = vector.load %arg1[%c0_4, %c0_5, %c1] : memref<1x4x324xf32, #tpu.memory_space<vmem>>, vector<1x4x286xf32>
    %4 = vector.shape_cast %3 : vector<1x4x286xf32> to vector<4x286xf32>
    %c4 = arith.constant 4 : index
    %c0_6 = arith.constant 0 : index
    %5 = vector.load %arg7[%c4, %c0_6] : memref<36x286xf32, #tpu.memory_space<vmem>>, vector<4x286xf32>
    tpu.vector_store %arg7[%c4, %c0_6], %4 {strides = array<i32>} : memref<36x286xf32, #tpu.memory_space<vmem>>, vector<4x286xf32>,
    %c0_7 = arith.constant 0 : index
    %c0_8 = arith.constant 0 : index
    %c2 = arith.constant 2 : index
    %6 = vector.load %arg1[%c0_7, %c0_8, %c2] : memref<1x4x324xf32, #tpu.memory_space<vmem>>, vector<1x4x286xf32>
    %7 = vector.shape_cast %6 : vector<1x4x286xf32> to vector<4x286xf32>
    %c8 = arith.constant 8 : index
    %c0_9 = arith.constant 0 : index
    %8 = vector.load %arg7[%c8, %c0_9] : memref<36x286xf32, #tpu.memory_space<vmem>>, vector<4x286xf32>
    tpu.vector_store %arg7[%c8, %c0_9], %7 {strides = array<i32>} : memref<36x286xf32, #tpu.memory_space<vmem>>, vector<4x286xf32>,
    %c0_10 = arith.constant 0 : index
    %c0_11 = arith.constant 0 : index
    %c18 = arith.constant 18 : index
    %9 = vector.load %arg1[%c0_10, %c0_11, %c18] : memref<1x4x324xf32, #tpu.memory_space<vmem>>, vector<1x4x286xf32>
    %10 = vector.shape_cast %9 : vector<1x4x286xf32> to vector<4x286xf32>
    %c12 = arith.constant 12 : index
    %c0_12 = arith.constant 0 : index
    %11 = vector.load %arg7[%c12, %c0_12] : memref<36x286xf32, #tpu.memory_space<vmem>>, vector<4x286xf32>
    tpu.vector_store %arg7[%c12, %c0_12], %10 {strides = array<i32>} : memref<36x286xf32, #tpu.memory_space<vmem>>, vector<4x286xf32>,
    %c0_13 = arith.constant 0 : index
    %c0_14 = arith.constant 0 : index
    %c19 = arith.constant 19 : index
    %12 = vector.load %arg1[%c0_13, %c0_14, %c19] : memref<1x4x324xf32, #tpu.memory_space<vmem>>, vector<1x4x286xf32>
    %13 = vector.shape_cast %12 : vector<1x4x286xf32> to vector<4x286xf32>
    %c16 = arith.constant 16 : index
    %c0_15 = arith.constant 0 : index
    %14 = vector.load %arg7[%c16, %c0_15] : memref<36x286xf32, #tpu.memory_space<vmem>>, vector<4x286xf32>
    tpu.vector_store %arg7[%c16, %c0_15], %13 {strides = array<i32>} : memref<36x286xf32, #tpu.memory_space<vmem>>, vector<4x286xf32>,
    %c0_16 = arith.constant 0 : index
    %c0_17 = arith.constant 0 : index
    %c20 = arith.constant 20 : index
    %15 = vector.load %arg1[%c0_16, %c0_17, %c20] : memref<1x4x324xf32, #tpu.memory_space<vmem>>, vector<1x4x286xf32>
    %16 = vector.shape_cast %15 : vector<1x4x286xf32> to vector<4x286xf32>
    %c20_18 = arith.constant 20 : index
    %c0_19 = arith.constant 0 : index
    %17 = vector.load %arg7[%c20_18, %c0_19] : memref<36x286xf32, #tpu.memory_space<vmem>>, vector<4x286xf32>
    tpu.vector_store %arg7[%c20_18, %c0_19], %16 {strides = array<i32>} : memref<36x286xf32, #tpu.memory_space<vmem>>, vector<4x286xf32>,
    %c0_20 = arith.constant 0 : index
    %c0_21 = arith.constant 0 : index
    %c36 = arith.constant 36 : index
    %18 = vector.load %arg1[%c0_20, %c0_21, %c36] : memref<1x4x324xf32, #tpu.memory_space<vmem>>, vector<1x4x286xf32>
    %19 = vector.shape_cast %18 : vector<1x4x286xf32> to vector<4x286xf32>
    %c24 = arith.constant 24 : index
    %c0_22 = arith.constant 0 : index
    %20 = vector.load %arg7[%c24, %c0_22] : memref<36x286xf32, #tpu.memory_space<vmem>>, vector<4x286xf32>
    tpu.vector_store %arg7[%c24, %c0_22], %19 {strides = array<i32>} : memref<36x286xf32, #tpu.memory_space<vmem>>, vector<4x286xf32>,
    %c0_23 = arith.constant 0 : index
    %c0_24 = arith.constant 0 : index
    %c37 = arith.constant 37 : index
    %21 = vector.load %arg1[%c0_23, %c0_24, %c37] : memref<1x4x324xf32, #tpu.memory_space<vmem>>, vector<1x4x286xf32>
    %22 = vector.shape_cast %21 : vector<1x4x286xf32> to vector<4x286xf32>
    %c28 = arith.constant 28 : index
    %c0_25 = arith.constant 0 : index
    %23 = vector.load %arg7[%c28, %c0_25] : memref<36x286xf32, #tpu.memory_space<vmem>>, vector<4x286xf32>
    tpu.vector_store %arg7[%c28, %c0_25], %22 {strides = array<i32>} : memref<36x286xf32, #tpu.memory_space<vmem>>, vector<4x286xf32>,
    %c0_26 = arith.constant 0 : index
    %c0_27 = arith.constant 0 : index
    %c38 = arith.constant 38 : index
    %24 = vector.load %arg1[%c0_26, %c0_27, %c38] : memref<1x4x324xf32, #tpu.memory_space<vmem>>, vector<1x4x286xf32>
    %25 = vector.shape_cast %24 : vector<1x4x286xf32> to vector<4x286xf32>
    %c32 = arith.constant 32 : index
    %c0_28 = arith.constant 0 : index
    %26 = vector.load %arg7[%c32, %c0_28] : memref<36x286xf32, #tpu.memory_space<vmem>>, vector<4x286xf32>
    tpu.vector_store %arg7[%c32, %c0_28], %25 {strides = array<i32>} : memref<36x286xf32, #tpu.memory_space<vmem>>, vector<4x286xf32>,
    %c0_29 = arith.constant 0 : index
    %c0_30 = arith.constant 0 : index
    %27 = vector.load %arg2[%c0_29, %c0_30] : memref<8x36xf32, #tpu.memory_space<vmem>>, vector<8x36xf32>
    %c0_31 = arith.constant 0 : index
    %c0_32 = arith.constant 0 : index
    %28 = vector.load %arg7[%c0_31, %c0_32] : memref<36x286xf32, #tpu.memory_space<vmem>>, vector<36x286xf32>
    %cst = arith.constant dense<0.000000e+00> : vector<8x286xf32>
    %29 = tpu.matmul %27, %28, %cst {dimension_numbers = #tpu.dot_dimension_numbers<[1], [0], [0], [1], [0, 0, 1, 1], [], []>} : vector<8x36xf32>, vector<36x286xf32>, vector<8x286xf32> -> vector<8x286xf32>
    %c0_33 = arith.constant 0 : index
    %c0_34 = arith.constant 0 : index
    %30 = vector.load %arg3[%c0_33, %c0_34] : memref<8x1xf32, #tpu.memory_space<vmem>>, vector<8x1xf32>
    %31 = vector.broadcast %30 : vector<8x1xf32> to vector<8x286xf32>
    %32 = arith.addf %29, %31 : vector<8x286xf32>
    %cst_35 = arith.constant 0.000000e+00 : f32
    %33 = vector.broadcast %cst_35 : f32 to vector<8x286xf32>
    %34 = arith.maximumf %32, %33 : vector<8x286xf32>
    %c0_36 = arith.constant 0 : index
    %c0_37 = arith.constant 0 : index
    %35 = vector.load %arg5[%c0_36, %c0_37] : memref<1x10xf32, #tpu.memory_space<vmem>>, vector<1x10xf32>
    %36 = vector.extract_strided_slice %34 {offsets = [0, 0], sizes = [1, 286], strides = [1, 1]} : vector<8x286xf32> to vector<1x286xf32>
    %c0_38 = arith.constant 0 : index
    %c0_39 = arith.constant 0 : index
    %c0_40 = arith.constant 0 : index
    %37 = vector.load %arg4[%c0_38, %c0_39, %c0_40] : memref<8x286x10xf32, #tpu.memory_space<vmem>>, vector<1x286x10xf32>
    %38 = vector.shape_cast %37 : vector<1x286x10xf32> to vector<286x10xf32>
    %cst_41 = arith.constant dense<0.000000e+00> : vector<1x10xf32>
    %39 = tpu.matmul %36, %38, %cst_41 {dimension_numbers = #tpu.dot_dimension_numbers<[1], [0], [0], [1], [0, 0, 1, 1], [], []>} : vector<1x286xf32>, vector<286x10xf32>, vector<1x10xf32> -> vector<1x10xf32>
    %40 = arith.addf %35, %39 : vector<1x10xf32>
    %41 = vector.extract_strided_slice %34 {offsets = [1, 0], sizes = [1, 286], strides = [1, 1]} : vector<8x286xf32> to vector<1x286xf32>
    %c1_42 = arith.constant 1 : index
    %c0_43 = arith.constant 0 : index
    %c0_44 = arith.constant 0 : index
    %42 = vector.load %arg4[%c1_42, %c0_43, %c0_44] : memref<8x286x10xf32, #tpu.memory_space<vmem>>, vector<1x286x10xf32>
    %43 = vector.shape_cast %42 : vector<1x286x10xf32> to vector<286x10xf32>
    %cst_45 = arith.constant dense<0.000000e+00> : vector<1x10xf32>
    %44 = tpu.matmul %41, %43, %cst_45 {dimension_numbers = #tpu.dot_dimension_numbers<[1], [0], [0], [1], [0, 0, 1, 1], [], []>} : vector<1x286xf32>, vector<286x10xf32>, vector<1x10xf32> -> vector<1x10xf32>
    %45 = arith.addf %40, %44 : vector<1x10xf32>
    %46 = vector.extract_strided_slice %34 {offsets = [2, 0], sizes = [1, 286], strides = [1, 1]} : vector<8x286xf32> to vector<1x286xf32>
    %c2_46 = arith.constant 2 : index
    %c0_47 = arith.constant 0 : index
    %c0_48 = arith.constant 0 : index
    %47 = vector.load %arg4[%c2_46, %c0_47, %c0_48] : memref<8x286x10xf32, #tpu.memory_space<vmem>>, vector<1x286x10xf32>
    %48 = vector.shape_cast %47 : vector<1x286x10xf32> to vector<286x10xf32>
    %cst_49 = arith.constant dense<0.000000e+00> : vector<1x10xf32>
    %49 = tpu.matmul %46, %48, %cst_49 {dimension_numbers = #tpu.dot_dimension_numbers<[1], [0], [0], [1], [0, 0, 1, 1], [], []>} : vector<1x286xf32>, vector<286x10xf32>, vector<1x10xf32> -> vector<1x10xf32>
    %50 = arith.addf %45, %49 : vector<1x10xf32>
    %51 = vector.extract_strided_slice %34 {offsets = [3, 0], sizes = [1, 286], strides = [1, 1]} : vector<8x286xf32> to vector<1x286xf32>
    %c3 = arith.constant 3 : index
    %c0_50 = arith.constant 0 : index
    %c0_51 = arith.constant 0 : index
    %52 = vector.load %arg4[%c3, %c0_50, %c0_51] : memref<8x286x10xf32, #tpu.memory_space<vmem>>, vector<1x286x10xf32>
    %53 = vector.shape_cast %52 : vector<1x286x10xf32> to vector<286x10xf32>
    %cst_52 = arith.constant dense<0.000000e+00> : vector<1x10xf32>
    %54 = tpu.matmul %51, %53, %cst_52 {dimension_numbers = #tpu.dot_dimension_numbers<[1], [0], [0], [1], [0, 0, 1, 1], [], []>} : vector<1x286xf32>, vector<286x10xf32>, vector<1x10xf32> -> vector<1x10xf32>
    %55 = arith.addf %50, %54 : vector<1x10xf32>
    %56 = vector.extract_strided_slice %34 {offsets = [4, 0], sizes = [1, 286], strides = [1, 1]} : vector<8x286xf32> to vector<1x286xf32>
    %c4_53 = arith.constant 4 : index
    %c0_54 = arith.constant 0 : index
    %c0_55 = arith.constant 0 : index
    %57 = vector.load %arg4[%c4_53, %c0_54, %c0_55] : memref<8x286x10xf32, #tpu.memory_space<vmem>>, vector<1x286x10xf32>
    %58 = vector.shape_cast %57 : vector<1x286x10xf32> to vector<286x10xf32>
    %cst_56 = arith.constant dense<0.000000e+00> : vector<1x10xf32>
    %59 = tpu.matmul %56, %58, %cst_56 {dimension_numbers = #tpu.dot_dimension_numbers<[1], [0], [0], [1], [0, 0, 1, 1], [], []>} : vector<1x286xf32>, vector<286x10xf32>, vector<1x10xf32> -> vector<1x10xf32>
    %60 = arith.addf %55, %59 : vector<1x10xf32>
    %61 = vector.extract_strided_slice %34 {offsets = [5, 0], sizes = [1, 286], strides = [1, 1]} : vector<8x286xf32> to vector<1x286xf32>
    %c5 = arith.constant 5 : index
    %c0_57 = arith.constant 0 : index
    %c0_58 = arith.constant 0 : index
    %62 = vector.load %arg4[%c5, %c0_57, %c0_58] : memref<8x286x10xf32, #tpu.memory_space<vmem>>, vector<1x286x10xf32>
    %63 = vector.shape_cast %62 : vector<1x286x10xf32> to vector<286x10xf32>
    %cst_59 = arith.constant dense<0.000000e+00> : vector<1x10xf32>
    %64 = tpu.matmul %61, %63, %cst_59 {dimension_numbers = #tpu.dot_dimension_numbers<[1], [0], [0], [1], [0, 0, 1, 1], [], []>} : vector<1x286xf32>, vector<286x10xf32>, vector<1x10xf32> -> vector<1x10xf32>
    %65 = arith.addf %60, %64 : vector<1x10xf32>
    %66 = vector.extract_strided_slice %34 {offsets = [6, 0], sizes = [1, 286], strides = [1, 1]} : vector<8x286xf32> to vector<1x286xf32>
    %c6 = arith.constant 6 : index
    %c0_60 = arith.constant 0 : index
    %c0_61 = arith.constant 0 : index
    %67 = vector.load %arg4[%c6, %c0_60, %c0_61] : memref<8x286x10xf32, #tpu.memory_space<vmem>>, vector<1x286x10xf32>
    %68 = vector.shape_cast %67 : vector<1x286x10xf32> to vector<286x10xf32>
    %cst_62 = arith.constant dense<0.000000e+00> : vector<1x10xf32>
    %69 = tpu.matmul %66, %68, %cst_62 {dimension_numbers = #tpu.dot_dimension_numbers<[1], [0], [0], [1], [0, 0, 1, 1], [], []>} : vector<1x286xf32>, vector<286x10xf32>, vector<1x10xf32> -> vector<1x10xf32>
    %70 = arith.addf %65, %69 : vector<1x10xf32>
    %71 = vector.extract_strided_slice %34 {offsets = [7, 0], sizes = [1, 286], strides = [1, 1]} : vector<8x286xf32> to vector<1x286xf32>
    %c7 = arith.constant 7 : index
    %c0_63 = arith.constant 0 : index
    %c0_64 = arith.constant 0 : index
    %72 = vector.load %arg4[%c7, %c0_63, %c0_64] : memref<8x286x10xf32, #tpu.memory_space<vmem>>, vector<1x286x10xf32>
    %73 = vector.shape_cast %72 : vector<1x286x10xf32> to vector<286x10xf32>
    %cst_65 = arith.constant dense<0.000000e+00> : vector<1x10xf32>
    %74 = tpu.matmul %71, %73, %cst_65 {dimension_numbers = #tpu.dot_dimension_numbers<[1], [0], [0], [1], [0, 0, 1, 1], [], []>} : vector<1x286xf32>, vector<286x10xf32>, vector<1x10xf32> -> vector<1x10xf32>
    %75 = arith.addf %70, %74 : vector<1x10xf32>
    %cst_66 = arith.constant dense<0xFF800000> : vector<1xf32>
    %76 = vector.multi_reduction <maximumf>, %75, %cst_66 [1] : vector<1x10xf32> to vector<1xf32>
    %77 = vector.shape_cast %76 : vector<1xf32> to vector<1x1xf32>
    %78 = vector.broadcast %77 : vector<1x1xf32> to vector<1x10xf32>
    %79 = arith.subf %75, %78 : vector<1x10xf32>
    %80 = math.exp %79 : vector<1x10xf32>
    %cst_67 = arith.constant dense<0.000000e+00> : vector<1xf32>
    %81 = vector.multi_reduction <add>, %80, %cst_67 [1] : vector<1x10xf32> to vector<1xf32>
    %82 = vector.shape_cast %81 : vector<1xf32> to vector<1x1xf32>
    %83 = tpu.reciprocal %82 : vector<1x1xf32> -> vector<1x1xf32>
    %84 = vector.broadcast %83 : vector<1x1xf32> to vector<1x10xf32>
    %85 = arith.mulf %80, %84 : vector<1x10xf32>
    %c0_68 = arith.constant 0 : index
    %c0_69 = arith.constant 0 : index
    %c0_70 = arith.constant 0 : index
    %86 = vector.load %arg6[%c0_68, %c0_69, %c0_70] : memref<1x1x10xf32, #tpu.memory_space<vmem>>, vector<1x1x10xf32>
    %87 = vector.shape_cast %86 : vector<1x1x10xf32> to vector<1x10xf32>
    %88 = vector.shape_cast %85 : vector<1x10xf32> to vector<1x1x10xf32>
    tpu.vector_store %arg6[%c0_68, %c0_69, %c0_70], %88 {strides = array<i32>} : memref<1x1x10xf32, #tpu.memory_space<vmem>>, vector<1x1x10xf32>,
    return
  }
  func.func @transform_0(%arg0: i32) -> (i32, i32, i32) {
    %c0_i32 = arith.constant 0 : i32
    %c0_i32_0 = arith.constant 0 : i32
    %c0_i32_1 = arith.constant 0 : i32
    return %arg0, %c0_i32, %c0_i32_0 : i32, i32, i32
  }
  func.func @transform_1(%arg0: i32) -> (i32, i32) {
    %c0_i32 = arith.constant 0 : i32
    %c0_i32_0 = arith.constant 0 : i32
    %c0_i32_1 = arith.constant 0 : i32
    return %c0_i32, %c0_i32_0 : i32, i32
  }
  func.func @transform_2(%arg0: i32) -> (i32, i32) {
    %c0_i32 = arith.constant 0 : i32
    %c0_i32_0 = arith.constant 0 : i32
    %c0_i32_1 = arith.constant 0 : i32
    return %c0_i32, %c0_i32_0 : i32, i32
  }
  func.func @transform_3(%arg0: i32) -> (i32, i32, i32) {
    %c0_i32 = arith.constant 0 : i32
    %c0_i32_0 = arith.constant 0 : i32
    %c0_i32_1 = arith.constant 0 : i32
    %c0_i32_2 = arith.constant 0 : i32
    return %c0_i32, %c0_i32_0, %c0_i32_1 : i32, i32, i32
  }
  func.func @transform_4(%arg0: i32) -> (i32, i32) {
    %c0_i32 = arith.constant 0 : i32
    %c0_i32_0 = arith.constant 0 : i32
    %c0_i32_1 = arith.constant 0 : i32
    return %c0_i32, %c0_i32_0 : i32, i32
  }
  func.func @transform_5(%arg0: i32) -> (i32, i32, i32) {
    %c0_i32 = arith.constant 0 : i32
    %c0_i32_0 = arith.constant 0 : i32
    %c0_i32_1 = arith.constant 0 : i32
    return %arg0, %c0_i32, %c0_i32_0 : i32, i32, i32
  }
}

</mosaic_0001>

<llo_original>
// kernel: tpu_custom_call.1
$region0: #{tpu_custom_call.1}
  #allocation0 [shape = 'u32[]', space=smem, size = 0x4, offset = 0x4, fixed_abs, tag = 'smem constant byte address 0x4 - core index']
  #allocation1 [shape = 'u32[144,128]{1,0:T(1,128)}', space=vmem, size = 0x12000, scoped, tag = 'internal scratch']
  #allocation2 [shape = 'f32[36,286]{1,0:T(8,128)}', space=vmem, size = 0xf000, scoped, tag = 'scratch operand']
  %s0 = inlined_call_operand.vmem [shape: f32[2,4,324], index: 0, kind: input, shape index: {}]
  %s1 = inlined_call_operand.vmem [shape: f32[8,36], index: 1, kind: input, shape index: {}]
  %s2 = inlined_call_operand.vmem [shape: f32[8,1], index: 2, kind: input, shape index: {}]
  %s3 = inlined_call_operand.vmem [shape: f32[8,286,10], index: 3, kind: input, shape index: {}]
  %s4 = inlined_call_operand.vmem [shape: f32[1,10], index: 4, kind: input, shape index: {}]
  %s5 = inlined_call_operand.hbm [shape: f32[2,1,10], index: 5, kind: output, shape index: {}]
  %s6 = sld [smem:[#allocation0]]
  $region53: #{tpu_custom_call.1} parent=0
    _
  %s8 = ssub.s32 1, %s6
  %s9 = scalar_select 0, %s8, %s6
  $region1: #{tpu_custom_call.1} parent=0
    #allocation3 [shape = 'u8[1024]{0}', space=vmem, size = 0x400, scoped, tag = 'output window, operand 0']
    #allocation4 [shape = 's32[2]{0}', space=sflag, size = 0x8, scoped, tag = 'scoped memory for tpu_custom_call.1']
    %10 = vsyncpa [#allocation4], 0
    %s11 = scalar_lea.sflag [#allocation4], 1
    %12 = vsyncpa %s11, 0
    loop: start=0, step=1, limit=4
    $region2: #{tpu_custom_call.1} parent=1 // loop_pre_header
      _
    $region3: #{tpu_custom_call.1} parent=1 // loop_header
      %s14 = sphi 0, %s18
      %p15 = scmp.ge.s32.totalorder %s14, 4
      %s24 = sphi 0, %s26
      %s27 = sphi 0, %s24
      %s28 = sphi 0, %s27
      %s44 = sphi 0, %s28
      %s48 = sphi 0, %s48
      %s50 = sphi 0, %s48
      %s51 = sphi 0, %s50
      %s65 = sphi 0, %s51
      %s69 = sphi 0, %s69
      %s71 = sphi 0, %s69
      %s72 = sphi 0, %s71
      %s86 = sphi 0, %s72
      %s90 = sphi 0, %s90
      %s92 = sphi 0, %s90
      %s93 = sphi 0, %s92
      %s107 = sphi 0, %s93
      %s111 = sphi 0, %s111
      %s113 = sphi 0, %s111
      %s114 = sphi 0, %s113
      %s128 = sphi 0, %s114
      %s134 = sphi 0, %s136
      %s137 = sphi 0, %s134
      %s138 = sphi 0, %s137
      %s154 = sphi 0, %s138
    $region4: #{tpu_custom_call.1} parent=1 // loop_header_branch
      %17 = sbr.rel (%p15) target = $region8
    $region5: #{tpu_custom_call.1} parent=1 // loop_body
      %s19 = ssub.s32 %s14, 1
      %s20 = ssub.s32 %s14, 2
      %s21 = sadd.s32 %s14, 1
      %s22 = ssub.s32 %s14, %s21
      %p23 = scmp.eq.s32.totalorder %s22, 0
      %s25 = sadd.s32 %s24, 1
      %s26 = scalar_select %p23, %s24, %s25
      %p29 = pneg %p23
      %p30 = scmp.eq.s32.totalorder %s14, 1
      %p31 = por %p29, %p30
      %p32 = scmp.ne.s32.totalorder %s24, %s27
      %p33 = scmp.eq.s32.totalorder %s14, 0
      %p34 = por %p32, %p33
      %p35 = scmp.ne.s32.totalorder %s24, %s27
      %p36 = scmp.eq.s32.totalorder %s19, 1
      %p37 = por %p35, %p36
      %p38 = scmp.ne.s32.totalorder %s27, %s28
      %p39 = scmp.eq.s32.totalorder %s19, 0
      %p40 = por %p38, %p39
      %p41 = scmp.ne.s32.totalorder %s27, %s28
      %p42 = scmp.eq.s32.totalorder %s20, 1
      %p43 = por %p41, %p42
      %p45 = scmp.ne.s32.totalorder %s28, %s44
      %p46 = scmp.eq.s32.totalorder %s20, 0
      %p47 = por %p45, %p46
      %s49 = sadd.s32 %s48, 1
      %p52 = scmp.eq.s32.totalorder %s14, 1
      %p53 = scmp.ne.s32.totalorder %s48, %s50
      %p54 = scmp.eq.s32.totalorder %s14, 0
      %p55 = por %p53, %p54
      %p56 = scmp.ne.s32.totalorder %s48, %s50
      %p57 = scmp.eq.s32.totalorder %s19, 1
      %p58 = por %p56, %p57
      %p59 = scmp.ne.s32.totalorder %s50, %s51
      %p60 = scmp.eq.s32.totalorder %s19, 0
      %p61 = por %p59, %p60
      %p62 = scmp.ne.s32.totalorder %s50, %s51
      %p63 = scmp.eq.s32.totalorder %s20, 1
      %p64 = por %p62, %p63
      %p66 = scmp.ne.s32.totalorder %s51, %s65
      %p67 = scmp.eq.s32.totalorder %s20, 0
      %p68 = por %p66, %p67
      %s70 = sadd.s32 %s69, 1
      %p73 = scmp.eq.s32.totalorder %s14, 1
      %p74 = scmp.ne.s32.totalorder %s69, %s71
      %p75 = scmp.eq.s32.totalorder %s14, 0
      %p76 = por %p74, %p75
      %p77 = scmp.ne.s32.totalorder %s69, %s71
      %p78 = scmp.eq.s32.totalorder %s19, 1
      %p79 = por %p77, %p78
      %p80 = scmp.ne.s32.totalorder %s71, %s72
      %p81 = scmp.eq.s32.totalorder %s19, 0
      %p82 = por %p80, %p81
      %p83 = scmp.ne.s32.totalorder %s71, %s72
      %p84 = scmp.eq.s32.totalorder %s20, 1
      %p85 = por %p83, %p84
      %p87 = scmp.ne.s32.totalorder %s72, %s86
      %p88 = scmp.eq.s32.totalorder %s20, 0
      %p89 = por %p87, %p88
      %s91 = sadd.s32 %s90, 1
      %p94 = scmp.eq.s32.totalorder %s14, 1
      %p95 = scmp.ne.s32.totalorder %s90, %s92
      %p96 = scmp.eq.s32.totalorder %s14, 0
      %p97 = por %p95, %p96
      %p98 = scmp.ne.s32.totalorder %s90, %s92
      %p99 = scmp.eq.s32.totalorder %s19, 1
      %p100 = por %p98, %p99
      %p101 = scmp.ne.s32.totalorder %s92, %s93
      %p102 = scmp.eq.s32.totalorder %s19, 0
      %p103 = por %p101, %p102
      %p104 = scmp.ne.s32.totalorder %s92, %s93
      %p105 = scmp.eq.s32.totalorder %s20, 1
      %p106 = por %p104, %p105
      %p108 = scmp.ne.s32.totalorder %s93, %s107
      %p109 = scmp.eq.s32.totalorder %s20, 0
      %p110 = por %p108, %p109
      %s112 = sadd.s32 %s111, 1
      %p115 = scmp.eq.s32.totalorder %s14, 1
      %p116 = scmp.ne.s32.totalorder %s111, %s113
      %p117 = scmp.eq.s32.totalorder %s14, 0
      %p118 = por %p116, %p117
      %p119 = scmp.ne.s32.totalorder %s111, %s113
      %p120 = scmp.eq.s32.totalorder %s19, 1
      %p121 = por %p119, %p120
      %p122 = scmp.ne.s32.totalorder %s113, %s114
      %p123 = scmp.eq.s32.totalorder %s19, 0
      %p124 = por %p122, %p123
      %p125 = scmp.ne.s32.totalorder %s113, %s114
      %p126 = scmp.eq.s32.totalorder %s20, 1
      %p127 = por %p125, %p126
      %p129 = scmp.ne.s32.totalorder %s114, %s128
      %p130 = scmp.eq.s32.totalorder %s20, 0
      %p131 = por %p129, %p130
      %s132 = ssub.s32 %s14, %s21
      %p133 = scmp.eq.s32.totalorder %s132, 0
      %s135 = sadd.s32 %s134, 1
      %s136 = scalar_select %p133, %s134, %s135
      %p139 = pneg %p133
      %p140 = scmp.eq.s32.totalorder %s14, 1
      %p141 = por %p139, %p140
      %p142 = scmp.ne.s32.totalorder %s134, %s137
      %p143 = scmp.eq.s32.totalorder %s14, 0
      %p144 = por %p142, %p143
      %p145 = scmp.ne.s32.totalorder %s134, %s137
      %p146 = scmp.eq.s32.totalorder %s19, 1
      %p147 = por %p145, %p146
      %p148 = scmp.ne.s32.totalorder %s137, %s138
      %p149 = scmp.eq.s32.totalorder %s19, 0
      %p150 = por %p148, %p149
      %p151 = scmp.ne.s32.totalorder %s137, %s138
      %p152 = scmp.eq.s32.totalorder %s20, 1
      %p153 = por %p151, %p152
      %p155 = scmp.ne.s32.totalorder %s138, %s154
      %p156 = scmp.eq.s32.totalorder %s20, 0
      %p157 = por %p155, %p156
      %p158 = scmp.le.s32.totalorder 1, %s14
      %p159 = scmp.lt.s32.totalorder %s14, 3
      %p160 = pnand %p158, %p159
      %p161 = pneg %p160
      // Predicated region
      $region9: #{tpu_custom_call.1} parent=5 // pred_check
        _
      $region10: #{tpu_custom_call.1} parent=5 // pred_check_branch
        %163 = sbr.rel (%p160) target = $region12
      $region11: #{tpu_custom_call.1} parent=5 // pred_region
        %s164 = ssub.s32 %s14, 1
        // Predicated region
        $region13: #{tpu_custom_call.1} parent=11 // pred_check
          %p165 = pneg %p61
        $region14: #{tpu_custom_call.1} parent=11 // pred_check_branch
          %167 = sbr.rel (%p165) target = $region16
        $region15: #{tpu_custom_call.1} parent=11 // pred_region
          _
        $region16: #{tpu_custom_call.1} parent=11 // pred_fallthru
          _
        // Predicated region
        $region17: #{tpu_custom_call.1} parent=11 // pred_check
          %p168 = pneg %p82
        $region18: #{tpu_custom_call.1} parent=11 // pred_check_branch
          %170 = sbr.rel (%p168) target = $region20
        $region19: #{tpu_custom_call.1} parent=11 // pred_region
          _
        $region20: #{tpu_custom_call.1} parent=11 // pred_fallthru
          _
        // Predicated region
        $region21: #{tpu_custom_call.1} parent=11 // pred_check
          %p171 = pneg %p103
        $region22: #{tpu_custom_call.1} parent=11 // pred_check_branch
          %173 = sbr.rel (%p171) target = $region24
        $region23: #{tpu_custom_call.1} parent=11 // pred_region
          _
        $region24: #{tpu_custom_call.1} parent=11 // pred_fallthru
          _
        // Predicated region
        $region25: #{tpu_custom_call.1} parent=11 // pred_check
          %p174 = pneg %p124
        $region26: #{tpu_custom_call.1} parent=11 // pred_check_branch
          %176 = sbr.rel (%p174) target = $region28
        $region27: #{tpu_custom_call.1} parent=11 // pred_region
          _
        $region28: #{tpu_custom_call.1} parent=11 // pred_fallthru
          _
      $region12: #{tpu_custom_call.1} parent=5 // pred_fallthru
        _
      %p177 = scmp.lt.s32.totalorder %s14, 2
      // Predicated region
      $region29: #{tpu_custom_call.1} parent=5 // pred_check
        %p178 = pneg %p177
      $region30: #{tpu_custom_call.1} parent=5 // pred_check_branch
        %180 = sbr.rel (%p178) target = $region32
      $region31: #{tpu_custom_call.1} parent=5 // pred_region
        // Predicated region
        $region33: #{tpu_custom_call.1} parent=31 // pred_check
          %p181 = pneg %p34
        $region34: #{tpu_custom_call.1} parent=31 // pred_check_branch
          %183 = sbr.rel (%p181) target = $region36
        $region35: #{tpu_custom_call.1} parent=31 // pred_region
          %p184 = scmp.lt.s32.totalorder %s14, 1
          %s185 = scalar_select %p184, %s14, 1
          %s186 = smul.addr %s185, 3
          %s187 = smul.addr %s186, 4
          %s188 = scalar_lea.vmem %s0, %s187
        $region36: #{tpu_custom_call.1} parent=31 // pred_fallthru
          _
      $region32: #{tpu_custom_call.1} parent=5 // pred_fallthru
        _
      %p189 = scmp.le.s32.totalorder 1, %s14
      %p190 = scmp.lt.s32.totalorder %s14, 3
      %p191 = pnand %p189, %p190
      %p192 = pneg %p191
      // Predicated region
      $region37: #{tpu_custom_call.1} parent=5 // pred_check
        _
      $region38: #{tpu_custom_call.1} parent=5 // pred_check_branch
        %194 = sbr.rel (%p191) target = $region40
      $region39: #{tpu_custom_call.1} parent=5 // pred_region
        %s195 = ssub.s32 %s14, 1
        %p196 = scmp.lt.s32.totalorder %s19, 1
        %s197 = scalar_select %p196, %s19, 1
        %s198 = smul.addr %s197, 3
        %s199 = smul.addr %s198, 4
        %s200 = scalar_lea.vmem %s0, %s199
        %p201 = pneg %p40
        %p202 = pneg %p37
        %p203 = pneg %p61
        %p204 = pneg %p58
        %p205 = pneg %p82
        %p206 = pneg %p79
        %p207 = pneg %p103
        %p208 = pneg %p100
        %p209 = pneg %p124
        %p210 = pneg %p121
        %p211 = pneg %p150
        %p212 = pneg %p147
        %s213 = sand.u32 %s137, 1
        %s214 = scalar_lea.sflag [#allocation4], %s213
        %s215 = sand.u32 %s137, 1
        %s216 = scalar_lea.vmem [#allocation3], %s215
        %p217 = scmp.lt.s32.totalorder %s19, 1
        %s218 = scalar_select %p217, %s19, 1
        %s219 = smul.addr %s218, 3
        %s220 = smul.addr %s219, 4
        %s221 = scalar_lea.vmem %s0, %s220
        %v222 = vld [vmem:[%s221] sm:$0xff]
        %v223 = vld [vmem:[%s221 + $0x8] sm:$0xf]
        %v225 = vcombine.high %v222, %v222
        %227 = vst [vmem:[#allocation2] sm:$0xf] %v222
        %228 = vst [vmem:[#allocation2 + $0x8] sm:$0xf] %v225
        %vm229 = vcmask 240640
        %230 = vst.msk [vmem:[#allocation2 + $0x10] sm:$0xf] %vm229, %v223
        %v231 = vld [vmem:[%s221] sm:$0xff]
        %v232 = vld [vmem:[%s221 + $0x8] sm:$0xf]
        %v235 = vcombine.low %v231, %v231
        %v236 = vcombine.low %v232, %v232
        %237 = vrot.lane.b32.xlu0 %v235, 127
        %v238 = vpop.permute.xlu0 %237
        %239 = vrot.lane.b32.xlu0 %v231, 127
        %v240 = vpop.permute.xlu0 %239
        %241 = vrot.lane.b32.xlu0 %v236, 127
        %v242 = vpop.permute.xlu0 %241
        %vm243 = vcmask 1039360
        %v244 = vsel %vm243, %v238, %v240
        %v245 = vsel %vm243, %v240, %v242
        %249 = vst [vmem:[#allocation2] sm:$0xf0] %v244
        %250 = vst [vmem:[#allocation2 + $0x8] sm:$0xf0] %v245
        %vm251 = vcmask 244740
        %252 = vst.msk [vmem:[#allocation2 + $0x10] sm:$0xf0] %vm251, %v242
        %v253 = vld [vmem:[%s221] sm:$0xff]
        %v254 = vld [vmem:[%s221 + $0x8] sm:$0xf]
        %v257 = vcombine.high %v253, %v253
        %258 = vrot.lane.b32.xlu0 %v253, 126
        %v259 = vpop.permute.xlu0 %258
        %260 = vrot.lane.b32.xlu0 %v257, 126
        %v261 = vpop.permute.xlu0 %260
        %262 = vrot.lane.b32.xlu0 %v254, 126
        %v263 = vpop.permute.xlu0 %262
        %vm264 = vcmask 1031168
        %v265 = vsel %vm264, %v259, %v261
        %v266 = vsel %vm264, %v261, %v263
        %270 = vst [vmem:[#allocation2 + $0x18] sm:$0xf] %v265
        %271 = vst [vmem:[#allocation2 + $0x20] sm:$0xf] %v266
        %272 = vst.msk [vmem:[#allocation2 + $0x28] sm:$0xf] %vm229, %v263
        %v273 = vld [vmem:[%s221] sm:$0xff]
        %v274 = vld [vmem:[%s221 + $0x8] sm:$0xf]
        %v277 = vcombine.low %v273, %v273
        %v278 = vcombine.low %v274, %v274
        %279 = vrot.lane.b32.xlu0 %v277, 110
        %v280 = vpop.permute.xlu0 %279
        %281 = vrot.lane.b32.xlu0 %v273, 110
        %v282 = vpop.permute.xlu0 %281
        %283 = vrot.lane.b32.xlu0 %v278, 110
        %v284 = vpop.permute.xlu0 %283
        %vm285 = vcmask 900096
        %v286 = vsel %vm285, %v280, %v282
        %v287 = vsel %vm285, %v282, %v284
        %291 = vst [vmem:[#allocation2 + $0x18] sm:$0xf0] %v286
        %292 = vst [vmem:[#allocation2 + $0x20] sm:$0xf0] %v287
        %293 = vst.msk [vmem:[#allocation2 + $0x28] sm:$0xf0] %vm251, %v284
        %v294 = vld [vmem:[%s221] sm:$0xff]
        %v295 = vld [vmem:[%s221 + $0x8] sm:$0xf]
        %v298 = vcombine.high %v294, %v294
        %299 = vrot.lane.b32.xlu0 %v294, 109
        %v300 = vpop.permute.xlu0 %299
        %301 = vrot.lane.b32.xlu0 %v298, 109
        %v302 = vpop.permute.xlu0 %301
        %303 = vrot.lane.b32.xlu0 %v295, 109
        %v304 = vpop.permute.xlu0 %303
        %vm305 = vcmask 891904
        %v306 = vsel %vm305, %v300, %v302
        %v307 = vsel %vm305, %v302, %v304
        %311 = vst [vmem:[#allocation2 + $0x30] sm:$0xf] %v306
        %312 = vst [vmem:[#allocation2 + $0x38] sm:$0xf] %v307
        %313 = vst.msk [vmem:[#allocation2 + $0x40] sm:$0xf] %vm229, %v304
        %v314 = vld [vmem:[%s221] sm:$0xff]
        %v315 = vld [vmem:[%s221 + $0x8] sm:$0xf]
        %v318 = vcombine.low %v314, %v314
        %v319 = vcombine.low %v315, %v315
        %320 = vrot.lane.b32.xlu0 %v318, 108
        %v321 = vpop.permute.xlu0 %320
        %322 = vrot.lane.b32.xlu0 %v314, 108
        %v323 = vpop.permute.xlu0 %322
        %324 = vrot.lane.b32.xlu0 %v319, 108
        %v325 = vpop.permute.xlu0 %324
        %vm326 = vcmask 883712
        %v327 = vsel %vm326, %v321, %v323
        %v328 = vsel %vm326, %v323, %v325
        %332 = vst [vmem:[#allocation2 + $0x30] sm:$0xf0] %v327
        %333 = vst [vmem:[#allocation2 + $0x38] sm:$0xf0] %v328
        %334 = vst.msk [vmem:[#allocation2 + $0x40] sm:$0xf0] %vm251, %v325
        %v335 = vld [vmem:[%s221] sm:$0xff]
        %v336 = vld [vmem:[%s221 + $0x8] sm:$0xf]
        %v339 = vcombine.high %v335, %v335
        %340 = vrot.lane.b32.xlu0 %v335, 92
        %v341 = vpop.permute.xlu0 %340
        %342 = vrot.lane.b32.xlu0 %v339, 92
        %v343 = vpop.permute.xlu0 %342
        %344 = vrot.lane.b32.xlu0 %v336, 92
        %v345 = vpop.permute.xlu0 %344
        %vm346 = vcmask 752640
        %v347 = vsel %vm346, %v341, %v343
        %v348 = vsel %vm346, %v343, %v345
        %352 = vst [vmem:[#allocation2 + $0x48] sm:$0xf] %v347
        %353 = vst [vmem:[#allocation2 + $0x50] sm:$0xf] %v348
        %354 = vst.msk [vmem:[#allocation2 + $0x58] sm:$0xf] %vm229, %v345
        %v355 = vld [vmem:[%s221] sm:$0xff]
        %v356 = vld [vmem:[%s221 + $0x8] sm:$0xf]
        %v359 = vcombine.low %v355, %v355
        %v360 = vcombine.low %v356, %v356
        %361 = vrot.lane.b32.xlu0 %v359, 91
        %v362 = vpop.permute.xlu0 %361
        %363 = vrot.lane.b32.xlu0 %v355, 91
        %v364 = vpop.permute.xlu0 %363
        %365 = vrot.lane.b32.xlu0 %v360, 91
        %v366 = vpop.permute.xlu0 %365
        %vm367 = vcmask 744448
        %v368 = vsel %vm367, %v362, %v364
        %v369 = vsel %vm367, %v364, %v366
        %373 = vst [vmem:[#allocation2 + $0x48] sm:$0xf0] %v368
        %374 = vst [vmem:[#allocation2 + $0x50] sm:$0xf0] %v369
        %375 = vst.msk [vmem:[#allocation2 + $0x58] sm:$0xf0] %vm251, %v366
        %v376 = vld [vmem:[%s221] sm:$0xff]
        %v377 = vld [vmem:[%s221 + $0x8] sm:$0xf]
        %v380 = vcombine.high %v376, %v376
        %381 = vrot.lane.b32.xlu0 %v376, 90
        %v382 = vpop.permute.xlu0 %381
        %383 = vrot.lane.b32.xlu0 %v380, 90
        %v384 = vpop.permute.xlu0 %383
        %385 = vrot.lane.b32.xlu0 %v377, 90
        %v386 = vpop.permute.xlu0 %385
        %vm387 = vcmask 736256
        %v388 = vsel %vm387, %v382, %v384
        %v389 = vsel %vm387, %v384, %v386
        %393 = vst [vmem:[#allocation2 + $0x60] sm:$0xf] %v388
        %394 = vst [vmem:[#allocation2 + $0x68] sm:$0xf] %v389
        %395 = vst.msk [vmem:[#allocation2 + $0x70] sm:$0xf] %vm229, %v386
        %v396 = vld [vmem:[%s1] sm:$0xff]
        %v397 = vld [vmem:[#allocation2] sm:$0xff]
        %v398 = vld [vmem:[#allocation2 + $0x8] sm:$0xff]
        %v399 = vld [vmem:[#allocation2 + $0x10] sm:$0xff]
        %v400 = vld [vmem:[#allocation2 + $0x18] sm:$0xff]
        %v401 = vld [vmem:[#allocation2 + $0x20] sm:$0xff]
        %v402 = vld [vmem:[#allocation2 + $0x28] sm:$0xff]
        %v403 = vld [vmem:[#allocation2 + $0x30] sm:$0xff]
        %v404 = vld [vmem:[#allocation2 + $0x38] sm:$0xff]
        %v405 = vld [vmem:[#allocation2 + $0x40] sm:$0xff]
        %v406 = vld [vmem:[#allocation2 + $0x48] sm:$0xff]
        %v407 = vld [vmem:[#allocation2 + $0x50] sm:$0xff]
        %v408 = vld [vmem:[#allocation2 + $0x58] sm:$0xff]
        %v409 = vld [vmem:[#allocation2 + $0x60] sm:$0xf]
        %v410 = vld [vmem:[#allocation2 + $0x68] sm:$0xf]
        %v411 = vld [vmem:[#allocation2 + $0x70] sm:$0xf]
        %v412 = vld [vmem:[%s2] sm:$0xff]
        %414 = vset.pattern.permute.xlu0 0
        %415 = vperm.xlu0 %414, %v412
        %v416 = vpop.permute.xlu0 %415
        %vm418 = vcmask 293888
        %v420 = vsel %vm418, %v396, 0
        %vm422 = vcmask 1043456
        %v424 = vsel %vm422, %v409, 0
        %v427 = vsel %vm422, %v410, 0
        %v430 = vsel %vm422, %v411, 0
        %432 = vmatprep.subr.mxu0 0.0
        %433 = vmatpush1.msra.mxu0 0.0
        %434 = vmatprep.subr.mxu0 0.0
        %435 = vmatpush1.msra.mxu0 0.0
        %436 = vmatprep.subr.mxu0 0.0
        %437 = vmatpush1.msra.mxu0 0.0
        %438 = vmatprep.subr.mxu0 0.0
        %439 = vmatpush1.msra.mxu0 0.0
        %440 = vmatprep.subr.mxu0 0.0
        %441 = vmatpush1.msra.mxu0 0.0
        %442 = vmatprep.subr.mxu0 0.0
        %443 = vmatpush1.msra.mxu0 0.0
        %444 = vmatprep.subr.mxu0 0.0
        %445 = vmatpush1.msra.mxu0 0.0
        %446 = vmatprep.subr.mxu0 0.0
        %447 = vmatpush1.msra.mxu0 0.0
        %448 = vmatprep.subr.mxu0 0.0
        %449 = vmatpush1.msra.mxu0 0.0
        %450 = vmatprep.subr.mxu0 0.0
        %451 = vmatpush1.msra.mxu0 0.0
        %452 = vmatprep.subr.mxu0 0.0
        %453 = vmatpush1.msra.mxu0 0.0
        %454 = vmatprep.subr.mxu0 %v427
        %455 = vmatpush1.msra.mxu0 %v424
        %456 = vmatprep.subr.mxu0 %v407
        %457 = vmatpush1.msra.mxu0 %v406
        %458 = vmatprep.subr.mxu0 %v404
        %459 = vmatpush1.msra.mxu0 %v403
        %460 = vmatprep.subr.mxu0 %v401
        %461 = vmatpush1.msra.mxu0 %v400
        %462 = vmatprep.subr.mxu0 %v398
        %463 = vmatpush1.msra.mxu0 %v397
        %464 = vmatprep.subr.mxu0 0.0
        %465 = vmatpush2.msra.mxu0 0.0
        %466 = vmatprep.subr.mxu0 0.0
        %467 = vmatpush2.msra.mxu0 0.0
        %468 = vmatprep.subr.mxu0 0.0
        %469 = vmatpush2.msra.mxu0 0.0
        %470 = vmatprep.subr.mxu0 0.0
        %471 = vmatpush2.msra.mxu0 0.0
        %472 = vmatprep.subr.mxu0 0.0
        %473 = vmatpush2.msra.mxu0 0.0
        %474 = vmatprep.subr.mxu0 0.0
        %475 = vmatpush2.msra.mxu0 0.0
        %476 = vmatprep.subr.mxu0 0.0
        %477 = vmatpush2.msra.mxu0 0.0
        %478 = vmatprep.subr.mxu0 0.0
        %479 = vmatpush2.msra.mxu0 0.0
        %480 = vmatprep.subr.mxu0 0.0
        %481 = vmatpush2.msra.mxu0 0.0
        %482 = vmatprep.subr.mxu0 0.0
        %483 = vmatpush2.msra.mxu0 0.0
        %484 = vmatprep.subr.mxu0 0.0
        %485 = vmatpush2.msra.mxu0 0.0
        %486 = vmatprep.subr.mxu0 0.0
        %487 = vmatpush2.msra.mxu0 0.0
        %488 = vmatprep.subr.mxu0 0.0
        %489 = vmatpush2.msra.mxu0 0.0
        %490 = vmatprep.subr.mxu0 0.0
        %491 = vmatpush2.msra.mxu0 0.0
        %492 = vmatprep.subr.mxu0 0.0
        %493 = vmatpush2.msra.mxu0 0.0
        %494 = vmatprep.subr.mxu0 0.0
        %495 = vmatpush2.msra.mxu0 0.0
        %496 = vmatprep.mubr.f32.mxu0 0.0
        %497 = vmatmul.mubr.f32.gmra.mxu0 %v420
        %v498 = vpop.f32.mrf.mxu0
        %v499 = vadd.f32 %v416, %v498
        %v500 = vpop.f32.mrf.mxu0
        %v501 = vadd.f32 %v416, %v500
        %502 = vdwg.mxu0
        %503 = vmatprep.subr.mxu0 0.0
        %504 = vmatpush1.msra.mxu0 0.0
        %505 = vmatprep.subr.mxu0 0.0
        %506 = vmatpush1.msra.mxu0 0.0
        %507 = vmatprep.subr.mxu0 0.0
        %508 = vmatpush1.msra.mxu0 0.0
        %509 = vmatprep.subr.mxu0 0.0
        %510 = vmatpush1.msra.mxu0 0.0
        %511 = vmatprep.subr.mxu0 0.0
        %512 = vmatpush1.msra.mxu0 0.0
        %513 = vmatprep.subr.mxu0 0.0
        %514 = vmatpush1.msra.mxu0 0.0
        %515 = vmatprep.subr.mxu0 0.0
        %516 = vmatpush1.msra.mxu0 0.0
        %517 = vmatprep.subr.mxu0 0.0
        %518 = vmatpush1.msra.mxu0 0.0
        %519 = vmatprep.subr.mxu0 0.0
        %520 = vmatpush1.msra.mxu0 0.0
        %521 = vmatprep.subr.mxu0 0.0
        %522 = vmatpush1.msra.mxu0 0.0
        %523 = vmatprep.subr.mxu0 0.0
        %524 = vmatpush1.msra.mxu0 0.0
        %525 = vmatprep.subr.mxu0 0.0
        %526 = vmatpush1.msra.mxu0 %v430
        %527 = vmatprep.subr.mxu0 0.0
        %528 = vmatpush1.msra.mxu0 %v408
        %529 = vmatprep.subr.mxu0 0.0
        %530 = vmatpush1.msra.mxu0 %v405
        %531 = vmatprep.subr.mxu0 0.0
        %532 = vmatpush1.msra.mxu0 %v402
        %533 = vmatprep.subr.mxu0 0.0
        %534 = vmatpush1.msra.mxu0 %v399
        %535 = vmatprep.subr.mxu0 0.0
        %536 = vmatpush2.msra.mxu0 0.0
        %537 = vmatprep.subr.mxu0 0.0
        %538 = vmatpush2.msra.mxu0 0.0
        %539 = vmatprep.subr.mxu0 0.0
        %540 = vmatpush2.msra.mxu0 0.0
        %541 = vmatprep.subr.mxu0 0.0
        %542 = vmatpush2.msra.mxu0 0.0
        %543 = vmatprep.subr.mxu0 0.0
        %544 = vmatpush2.msra.mxu0 0.0
        %545 = vmatprep.subr.mxu0 0.0
        %546 = vmatpush2.msra.mxu0 0.0
        %547 = vmatprep.subr.mxu0 0.0
        %548 = vmatpush2.msra.mxu0 0.0
        %549 = vmatprep.subr.mxu0 0.0
        %550 = vmatpush2.msra.mxu0 0.0
        %551 = vmatprep.subr.mxu0 0.0
        %552 = vmatpush2.msra.mxu0 0.0
        %553 = vmatprep.subr.mxu0 0.0
        %554 = vmatpush2.msra.mxu0 0.0
        %555 = vmatprep.subr.mxu0 0.0
        %556 = vmatpush2.msra.mxu0 0.0
        %557 = vmatprep.subr.mxu0 0.0
        %558 = vmatpush2.msra.mxu0 0.0
        %559 = vmatprep.subr.mxu0 0.0
        %560 = vmatpush2.msra.mxu0 0.0
        %561 = vmatprep.subr.mxu0 0.0
        %562 = vmatpush2.msra.mxu0 0.0
        %563 = vmatprep.subr.mxu0 0.0
        %564 = vmatpush2.msra.mxu0 0.0
        %565 = vmatprep.subr.mxu0 0.0
        %566 = vmatpush2.msra.mxu0 0.0
        %567 = vmatprep.mubr.f32.mxu0 0.0
        %568 = vmatmul.mubr.f32.gmra.mxu0 %v420
        %v569 = vpop.f32.mrf.mxu0
        %v570 = vadd.f32 %v416, %v569
        %v571 = vpop.f32.mrf.mxu0
        %572 = vdwg.mxu0
        %v573 = vmax.f32 %v499, 0.0
        %v574 = vmax.f32 %v501, 0.0
        %v575 = vmax.f32 %v570, 0.0
        %v576 = vld [vmem:[%s4] sm:$0x1]
        %v577 = vld [vmem:[%s3] sm:$0xff]
        %v578 = vld [vmem:[%s3 + $0x8] sm:$0xff]
        %v579 = vld [vmem:[%s3 + $0x10] sm:$0xff]
        %v580 = vld [vmem:[%s3 + $0x18] sm:$0xff]
        %v581 = vld [vmem:[%s3 + $0x20] sm:$0xff]
        %v582 = vld [vmem:[%s3 + $0x28] sm:$0xff]
        %v583 = vld [vmem:[%s3 + $0x30] sm:$0xff]
        %v584 = vld [vmem:[%s3 + $0x38] sm:$0xff]
        %v585 = vld [vmem:[%s3 + $0x40] sm:$0xff]
        %v586 = vld [vmem:[%s3 + $0x48] sm:$0xff]
        %v587 = vld [vmem:[%s3 + $0x50] sm:$0xff]
        %v588 = vld [vmem:[%s3 + $0x58] sm:$0xff]
        %v589 = vld [vmem:[%s3 + $0x60] sm:$0xff]
        %v590 = vld [vmem:[%s3 + $0x68] sm:$0xff]
        %v591 = vld [vmem:[%s3 + $0x70] sm:$0xff]
        %v592 = vld [vmem:[%s3 + $0x78] sm:$0xff]
        %v593 = vld [vmem:[%s3 + $0x80] sm:$0xff]
        %v594 = vld [vmem:[%s3 + $0x88] sm:$0xff]
        %v595 = vld [vmem:[%s3 + $0x90] sm:$0xff]
        %v596 = vld [vmem:[%s3 + $0x98] sm:$0xff]
        %v597 = vld [vmem:[%s3 + $0xa0] sm:$0xff]
        %v598 = vld [vmem:[%s3 + $0xa8] sm:$0xff]
        %v599 = vld [vmem:[%s3 + $0xb0] sm:$0xff]
        %v600 = vld [vmem:[%s3 + $0xb8] sm:$0xff]
        %v601 = vld [vmem:[%s3 + $0xc0] sm:$0xff]
        %v602 = vld [vmem:[%s3 + $0xc8] sm:$0xff]
        %v603 = vld [vmem:[%s3 + $0xd0] sm:$0xff]
        %v604 = vld [vmem:[%s3 + $0xd8] sm:$0xff]
        %v605 = vld [vmem:[%s3 + $0xe0] sm:$0xff]
        %v606 = vld [vmem:[%s3 + $0xe8] sm:$0xff]
        %v607 = vld [vmem:[%s3 + $0xf0] sm:$0xff]
        %v608 = vld [vmem:[%s3 + $0xf8] sm:$0xff]
        %v609 = vld [vmem:[%s3 + $0x100] sm:$0xff]
        %v610 = vld [vmem:[%s3 + $0x108] sm:$0xff]
        %v611 = vld [vmem:[%s3 + $0x110] sm:$0xff]
        %v612 = vld [vmem:[%s3 + $0x118] sm:$0x3f]
        %vm613 = vcmask 244736
        %v615 = vsel %vm613, %v575, 0
        %vm617 = vcmask 1045504
        %v619 = vsel %vm617, %v612, 0
        %621 = vmatprep.subr.mxu0 0.0
        %622 = vmatpush1.msra.mxu0 %v592
        %623 = vmatprep.subr.mxu0 0.0
        %624 = vmatpush1.msra.mxu0 %v591
        %625 = vmatprep.subr.mxu0 0.0
        %626 = vmatpush1.msra.mxu0 %v590
        %627 = vmatprep.subr.mxu0 0.0
        %628 = vmatpush1.msra.mxu0 %v589
        %629 = vmatprep.subr.mxu0 0.0
        %630 = vmatpush1.msra.mxu0 %v588
        %631 = vmatprep.subr.mxu0 0.0
        %632 = vmatpush1.msra.mxu0 %v587
        %633 = vmatprep.subr.mxu0 0.0
        %634 = vmatpush1.msra.mxu0 %v586
        %635 = vmatprep.subr.mxu0 0.0
        %636 = vmatpush1.msra.mxu0 %v585
        %637 = vmatprep.subr.mxu0 0.0
        %638 = vmatpush1.msra.mxu0 %v584
        %639 = vmatprep.subr.mxu0 0.0
        %640 = vmatpush1.msra.mxu0 %v583
        %641 = vmatprep.subr.mxu0 0.0
        %642 = vmatpush1.msra.mxu0 %v582
        %643 = vmatprep.subr.mxu0 0.0
        %644 = vmatpush1.msra.mxu0 %v581
        %645 = vmatprep.subr.mxu0 0.0
        %646 = vmatpush1.msra.mxu0 %v580
        %647 = vmatprep.subr.mxu0 0.0
        %648 = vmatpush1.msra.mxu0 %v579
        %649 = vmatprep.subr.mxu0 0.0
        %650 = vmatpush1.msra.mxu0 %v578
        %651 = vmatprep.subr.mxu0 0.0
        %652 = vmatpush1.msra.mxu0 %v577
        %653 = vmatprep.subr.mxu0 0.0
        %654 = vmatpush2.msra.mxu0 %v608
        %655 = vmatprep.subr.mxu0 0.0
        %656 = vmatpush2.msra.mxu0 %v607
        %657 = vmatprep.subr.mxu0 0.0
        %658 = vmatpush2.msra.mxu0 %v606
        %659 = vmatprep.subr.mxu0 0.0
        %660 = vmatpush2.msra.mxu0 %v605
        %661 = vmatprep.subr.mxu0 0.0
        %662 = vmatpush2.msra.mxu0 %v604
        %663 = vmatprep.subr.mxu0 0.0
        %664 = vmatpush2.msra.mxu0 %v603
        %665 = vmatprep.subr.mxu0 0.0
        %666 = vmatpush2.msra.mxu0 %v602
        %667 = vmatprep.subr.mxu0 0.0
        %668 = vmatpush2.msra.mxu0 %v601
        %669 = vmatprep.subr.mxu0 0.0
        %670 = vmatpush2.msra.mxu0 %v600
        %671 = vmatprep.subr.mxu0 0.0
        %672 = vmatpush2.msra.mxu0 %v599
        %673 = vmatprep.subr.mxu0 0.0
        %674 = vmatpush2.msra.mxu0 %v598
        %675 = vmatprep.subr.mxu0 0.0
        %676 = vmatpush2.msra.mxu0 %v597
        %677 = vmatprep.subr.mxu0 0.0
        %678 = vmatpush2.msra.mxu0 %v596
        %679 = vmatprep.subr.mxu0 0.0
        %680 = vmatpush2.msra.mxu0 %v595
        %681 = vmatprep.subr.mxu0 0.0
        %682 = vmatpush2.msra.mxu0 %v594
        %683 = vmatprep.subr.mxu0 0.0
        %684 = vmatpush2.msra.mxu0 %v593
        %685 = vmatprep.mubr.f32.mxu0 %v574
        %686 = vmatmul.mubr.f32.gmra.mxu0 %v573
        %v687 = vpop.f32.mrf.mxu0
        %v688 = vadd.f32 0.0, %v687
        %v689 = vpop.f32.mrf.mxu0
        %690 = vdwg.mxu0
        %691 = vmatprep.subr.mxu0 0.0
        %692 = vmatpush1.msra.mxu0 0.0
        %693 = vmatprep.subr.mxu0 0.0
        %694 = vmatpush1.msra.mxu0 0.0
        %695 = vmatprep.subr.mxu0 0.0
        %696 = vmatpush1.msra.mxu0 0.0
        %697 = vmatprep.subr.mxu0 0.0
        %698 = vmatpush1.msra.mxu0 0.0
        %699 = vmatprep.subr.mxu0 0.0
        %700 = vmatpush1.msra.mxu0 0.0
        %701 = vmatprep.subr.mxu0 0.0
        %702 = vmatpush1.msra.mxu0 0.0
        %703 = vmatprep.subr.mxu0 0.0
        %704 = vmatpush1.msra.mxu0 0.0
        %705 = vmatprep.subr.mxu0 0.0
        %706 = vmatpush1.msra.mxu0 0.0
        %707 = vmatprep.subr.mxu0 0.0
        %708 = vmatpush1.msra.mxu0 0.0
        %709 = vmatprep.subr.mxu0 0.0
        %710 = vmatpush1.msra.mxu0 0.0
        %711 = vmatprep.subr.mxu0 0.0
        %712 = vmatpush1.msra.mxu0 0.0
        %713 = vmatprep.subr.mxu0 0.0
        %714 = vmatpush1.msra.mxu0 0.0
        %715 = vmatprep.subr.mxu0 0.0
        %716 = vmatpush1.msra.mxu0 %v619
        %717 = vmatprep.subr.mxu0 0.0
        %718 = vmatpush1.msra.mxu0 %v611
        %719 = vmatprep.subr.mxu0 0.0
        %720 = vmatpush1.msra.mxu0 %v610
        %721 = vmatprep.subr.mxu0 0.0
        %722 = vmatpush1.msra.mxu0 %v609
        %723 = vmatprep.subr.mxu0 0.0
        %724 = vmatpush2.msra.mxu0 0.0
        %725 = vmatprep.subr.mxu0 0.0
        %726 = vmatpush2.msra.mxu0 0.0
        %727 = vmatprep.subr.mxu0 0.0
        %728 = vmatpush2.msra.mxu0 0.0
        %729 = vmatprep.subr.mxu0 0.0
        %730 = vmatpush2.msra.mxu0 0.0
        %731 = vmatprep.subr.mxu0 0.0
        %732 = vmatpush2.msra.mxu0 0.0
        %733 = vmatprep.subr.mxu0 0.0
        %734 = vmatpush2.msra.mxu0 0.0
        %735 = vmatprep.subr.mxu0 0.0
        %736 = vmatpush2.msra.mxu0 0.0
        %737 = vmatprep.subr.mxu0 0.0
        %738 = vmatpush2.msra.mxu0 0.0
        %739 = vmatprep.subr.mxu0 0.0
        %740 = vmatpush2.msra.mxu0 0.0
        %741 = vmatprep.subr.mxu0 0.0
        %742 = vmatpush2.msra.mxu0 0.0
        %743 = vmatprep.subr.mxu0 0.0
        %744 = vmatpush2.msra.mxu0 0.0
        %745 = vmatprep.subr.mxu0 0.0
        %746 = vmatpush2.msra.mxu0 0.0
        %747 = vmatprep.subr.mxu0 0.0
        %748 = vmatpush2.msra.mxu0 0.0
        %749 = vmatprep.subr.mxu0 0.0
        %750 = vmatpush2.msra.mxu0 0.0
        %751 = vmatprep.subr.mxu0 0.0
        %752 = vmatpush2.msra.mxu0 0.0
        %753 = vmatprep.subr.mxu0 0.0
        %754 = vmatpush2.msra.mxu0 0.0
        %755 = vmatprep.mubr.f32.mxu0 0.0
        %756 = vmatmul.mubr.f32.gmra.mxu0 %v615
        %v757 = vpop.f32.mrf.mxu0
        %v758 = vadd.f32 %v688, %v757
        %v759 = vpop.f32.mrf.mxu0
        %760 = vdwg.mxu0
        %v761 = vadd.f32 %v576, %v758
        %s762 = scalar_lea.vmem %s3, 288
        %v763 = vld [vmem:[%s762] sm:$0xff]
        %v764 = vld [vmem:[%s762 + $0x8] sm:$0xff]
        %v765 = vld [vmem:[%s762 + $0x10] sm:$0xff]
        %v766 = vld [vmem:[%s762 + $0x18] sm:$0xff]
        %v767 = vld [vmem:[%s762 + $0x20] sm:$0xff]
        %v768 = vld [vmem:[%s762 + $0x28] sm:$0xff]
        %v769 = vld [vmem:[%s762 + $0x30] sm:$0xff]
        %v770 = vld [vmem:[%s762 + $0x38] sm:$0xff]
        %v771 = vld [vmem:[%s762 + $0x40] sm:$0xff]
        %v772 = vld [vmem:[%s762 + $0x48] sm:$0xff]
        %v773 = vld [vmem:[%s762 + $0x50] sm:$0xff]
        %v774 = vld [vmem:[%s762 + $0x58] sm:$0xff]
        %v775 = vld [vmem:[%s762 + $0x60] sm:$0xff]
        %v776 = vld [vmem:[%s762 + $0x68] sm:$0xff]
        %v777 = vld [vmem:[%s762 + $0x70] sm:$0xff]
        %v778 = vld [vmem:[%s762 + $0x78] sm:$0xff]
        %v779 = vld [vmem:[%s762 + $0x80] sm:$0xff]
        %v780 = vld [vmem:[%s762 + $0x88] sm:$0xff]
        %v781 = vld [vmem:[%s762 + $0x90] sm:$0xff]
        %v782 = vld [vmem:[%s762 + $0x98] sm:$0xff]
        %v783 = vld [vmem:[%s762 + $0xa0] sm:$0xff]
        %v784 = vld [vmem:[%s762 + $0xa8] sm:$0xff]
        %v785 = vld [vmem:[%s762 + $0xb0] sm:$0xff]
        %v786 = vld [vmem:[%s762 + $0xb8] sm:$0xff]
        %v787 = vld [vmem:[%s762 + $0xc0] sm:$0xff]
        %v788 = vld [vmem:[%s762 + $0xc8] sm:$0xff]
        %v789 = vld [vmem:[%s762 + $0xd0] sm:$0xff]
        %v790 = vld [vmem:[%s762 + $0xd8] sm:$0xff]
        %v791 = vld [vmem:[%s762 + $0xe0] sm:$0xff]
        %v792 = vld [vmem:[%s762 + $0xe8] sm:$0xff]
        %v793 = vld [vmem:[%s762 + $0xf0] sm:$0xff]
        %v794 = vld [vmem:[%s762 + $0xf8] sm:$0xff]
        %v795 = vld [vmem:[%s762 + $0x100] sm:$0xff]
        %v796 = vld [vmem:[%s762 + $0x108] sm:$0xff]
        %v797 = vld [vmem:[%s762 + $0x110] sm:$0xff]
        %v798 = vld [vmem:[%s762 + $0x118] sm:$0x3f]
        %v801 = vrot.slane %v573, 1
        %v802 = vrot.slane %v574, 1
        %v803 = vrot.slane %v575, 1
        %v806 = vsel %vm613, %v803, 0
        %v809 = vsel %vm617, %v798, 0
        %811 = vmatprep.subr.mxu0 0.0
        %812 = vmatpush1.msra.mxu0 %v778
        %813 = vmatprep.subr.mxu0 0.0
        %814 = vmatpush1.msra.mxu0 %v777
        %815 = vmatprep.subr.mxu0 0.0
        %816 = vmatpush1.msra.mxu0 %v776
        %817 = vmatprep.subr.mxu0 0.0
        %818 = vmatpush1.msra.mxu0 %v775
        %819 = vmatprep.subr.mxu0 0.0
        %820 = vmatpush1.msra.mxu0 %v774
        %821 = vmatprep.subr.mxu0 0.0
        %822 = vmatpush1.msra.mxu0 %v773
        %823 = vmatprep.subr.mxu0 0.0
        %824 = vmatpush1.msra.mxu0 %v772
        %825 = vmatprep.subr.mxu0 0.0
        %826 = vmatpush1.msra.mxu0 %v771
        %827 = vmatprep.subr.mxu0 0.0
        %828 = vmatpush1.msra.mxu0 %v770
        %829 = vmatprep.subr.mxu0 0.0
        %830 = vmatpush1.msra.mxu0 %v769
        %831 = vmatprep.subr.mxu0 0.0
        %832 = vmatpush1.msra.mxu0 %v768
        %833 = vmatprep.subr.mxu0 0.0
        %834 = vmatpush1.msra.mxu0 %v767
        %835 = vmatprep.subr.mxu0 0.0
        %836 = vmatpush1.msra.mxu0 %v766
        %837 = vmatprep.subr.mxu0 0.0
        %838 = vmatpush1.msra.mxu0 %v765
        %839 = vmatprep.subr.mxu0 0.0
        %840 = vmatpush1.msra.mxu0 %v764
        %841 = vmatprep.subr.mxu0 0.0
        %842 = vmatpush1.msra.mxu0 %v763
        %843 = vmatprep.subr.mxu0 0.0
        %844 = vmatpush2.msra.mxu0 %v794
        %845 = vmatprep.subr.mxu0 0.0
        %846 = vmatpush2.msra.mxu0 %v793
        %847 = vmatprep.subr.mxu0 0.0
        %848 = vmatpush2.msra.mxu0 %v792
        %849 = vmatprep.subr.mxu0 0.0
        %850 = vmatpush2.msra.mxu0 %v791
        %851 = vmatprep.subr.mxu0 0.0
        %852 = vmatpush2.msra.mxu0 %v790
        %853 = vmatprep.subr.mxu0 0.0
        %854 = vmatpush2.msra.mxu0 %v789
        %855 = vmatprep.subr.mxu0 0.0
        %856 = vmatpush2.msra.mxu0 %v788
        %857 = vmatprep.subr.mxu0 0.0
        %858 = vmatpush2.msra.mxu0 %v787
        %859 = vmatprep.subr.mxu0 0.0
        %860 = vmatpush2.msra.mxu0 %v786
        %861 = vmatprep.subr.mxu0 0.0
        %862 = vmatpush2.msra.mxu0 %v785
        %863 = vmatprep.subr.mxu0 0.0
        %864 = vmatpush2.msra.mxu0 %v784
        %865 = vmatprep.subr.mxu0 0.0
        %866 = vmatpush2.msra.mxu0 %v783
        %867 = vmatprep.subr.mxu0 0.0
        %868 = vmatpush2.msra.mxu0 %v782
        %869 = vmatprep.subr.mxu0 0.0
        %870 = vmatpush2.msra.mxu0 %v781
        %871 = vmatprep.subr.mxu0 0.0
        %872 = vmatpush2.msra.mxu0 %v780
        %873 = vmatprep.subr.mxu0 0.0
        %874 = vmatpush2.msra.mxu0 %v779
        %875 = vmatprep.mubr.f32.mxu0 %v802
        %876 = vmatmul.mubr.f32.gmra.mxu0 %v801
        %v877 = vpop.f32.mrf.mxu0
        %v878 = vadd.f32 0.0, %v877
        %v879 = vpop.f32.mrf.mxu0
        %880 = vdwg.mxu0
        %881 = vmatprep.subr.mxu0 0.0
        %882 = vmatpush1.msra.mxu0 0.0
        %883 = vmatprep.subr.mxu0 0.0
        %884 = vmatpush1.msra.mxu0 0.0
        %885 = vmatprep.subr.mxu0 0.0
        %886 = vmatpush1.msra.mxu0 0.0
        %887 = vmatprep.subr.mxu0 0.0
        %888 = vmatpush1.msra.mxu0 0.0
        %889 = vmatprep.subr.mxu0 0.0
        %890 = vmatpush1.msra.mxu0 0.0
        %891 = vmatprep.subr.mxu0 0.0
        %892 = vmatpush1.msra.mxu0 0.0
        %893 = vmatprep.subr.mxu0 0.0
        %894 = vmatpush1.msra.mxu0 0.0
        %895 = vmatprep.subr.mxu0 0.0
        %896 = vmatpush1.msra.mxu0 0.0
        %897 = vmatprep.subr.mxu0 0.0
        %898 = vmatpush1.msra.mxu0 0.0
        %899 = vmatprep.subr.mxu0 0.0
        %900 = vmatpush1.msra.mxu0 0.0
        %901 = vmatprep.subr.mxu0 0.0
        %902 = vmatpush1.msra.mxu0 0.0
        %903 = vmatprep.subr.mxu0 0.0
        %904 = vmatpush1.msra.mxu0 0.0
        %905 = vmatprep.subr.mxu0 0.0
        %906 = vmatpush1.msra.mxu0 %v809
        %907 = vmatprep.subr.mxu0 0.0
        %908 = vmatpush1.msra.mxu0 %v797
        %909 = vmatprep.subr.mxu0 0.0
        %910 = vmatpush1.msra.mxu0 %v796
        %911 = vmatprep.subr.mxu0 0.0
        %912 = vmatpush1.msra.mxu0 %v795
        %913 = vmatprep.subr.mxu0 0.0
        %914 = vmatpush2.msra.mxu0 0.0
        %915 = vmatprep.subr.mxu0 0.0
        %916 = vmatpush2.msra.mxu0 0.0
        %917 = vmatprep.subr.mxu0 0.0
        %918 = vmatpush2.msra.mxu0 0.0
        %919 = vmatprep.subr.mxu0 0.0
        %920 = vmatpush2.msra.mxu0 0.0
        %921 = vmatprep.subr.mxu0 0.0
        %922 = vmatpush2.msra.mxu0 0.0
        %923 = vmatprep.subr.mxu0 0.0
        %924 = vmatpush2.msra.mxu0 0.0
        %925 = vmatprep.subr.mxu0 0.0
        %926 = vmatpush2.msra.mxu0 0.0
        %927 = vmatprep.subr.mxu0 0.0
        %928 = vmatpush2.msra.mxu0 0.0
        %929 = vmatprep.subr.mxu0 0.0
        %930 = vmatpush2.msra.mxu0 0.0
        %931 = vmatprep.subr.mxu0 0.0
        %932 = vmatpush2.msra.mxu0 0.0
        %933 = vmatprep.subr.mxu0 0.0
        %934 = vmatpush2.msra.mxu0 0.0
        %935 = vmatprep.subr.mxu0 0.0
        %936 = vmatpush2.msra.mxu0 0.0
        %937 = vmatprep.subr.mxu0 0.0
        %938 = vmatpush2.msra.mxu0 0.0
        %939 = vmatprep.subr.mxu0 0.0
        %940 = vmatpush2.msra.mxu0 0.0
        %941 = vmatprep.subr.mxu0 0.0
        %942 = vmatpush2.msra.mxu0 0.0
        %943 = vmatprep.subr.mxu0 0.0
        %944 = vmatpush2.msra.mxu0 0.0
        %945 = vmatprep.mubr.f32.mxu0 0.0
        %946 = vmatmul.mubr.f32.gmra.mxu0 %v806
        %v947 = vpop.f32.mrf.mxu0
        %v948 = vadd.f32 %v878, %v947
        %v949 = vpop.f32.mrf.mxu0
        %950 = vdwg.mxu0
        %v951 = vadd.f32 %v761, %v948
        %s952 = scalar_lea.vmem %s3, 576
        %v953 = vld [vmem:[%s952] sm:$0xff]
        %v954 = vld [vmem:[%s952 + $0x8] sm:$0xff]
        %v955 = vld [vmem:[%s952 + $0x10] sm:$0xff]
        %v956 = vld [vmem:[%s952 + $0x18] sm:$0xff]
        %v957 = vld [vmem:[%s952 + $0x20] sm:$0xff]
        %v958 = vld [vmem:[%s952 + $0x28] sm:$0xff]
        %v959 = vld [vmem:[%s952 + $0x30] sm:$0xff]
        %v960 = vld [vmem:[%s952 + $0x38] sm:$0xff]
        %v961 = vld [vmem:[%s952 + $0x40] sm:$0xff]
        %v962 = vld [vmem:[%s952 + $0x48] sm:$0xff]
        %v963 = vld [vmem:[%s952 + $0x50] sm:$0xff]
        %v964 = vld [vmem:[%s952 + $0x58] sm:$0xff]
        %v965 = vld [vmem:[%s952 + $0x60] sm:$0xff]
        %v966 = vld [vmem:[%s952 + $0x68] sm:$0xff]
        %v967 = vld [vmem:[%s952 + $0x70] sm:$0xff]
        %v968 = vld [vmem:[%s952 + $0x78] sm:$0xff]
        %v969 = vld [vmem:[%s952 + $0x80] sm:$0xff]
        %v970 = vld [vmem:[%s952 + $0x88] sm:$0xff]
        %v971 = vld [vmem:[%s952 + $0x90] sm:$0xff]
        %v972 = vld [vmem:[%s952 + $0x98] sm:$0xff]
        %v973 = vld [vmem:[%s952 + $0xa0] sm:$0xff]
        %v974 = vld [vmem:[%s952 + $0xa8] sm:$0xff]
        %v975 = vld [vmem:[%s952 + $0xb0] sm:$0xff]
        %v976 = vld [vmem:[%s952 + $0xb8] sm:$0xff]
        %v977 = vld [vmem:[%s952 + $0xc0] sm:$0xff]
        %v978 = vld [vmem:[%s952 + $0xc8] sm:$0xff]
        %v979 = vld [vmem:[%s952 + $0xd0] sm:$0xff]
        %v980 = vld [vmem:[%s952 + $0xd8] sm:$0xff]
        %v981 = vld [vmem:[%s952 + $0xe0] sm:$0xff]
        %v982 = vld [vmem:[%s952 + $0xe8] sm:$0xff]
        %v983 = vld [vmem:[%s952 + $0xf0] sm:$0xff]
        %v984 = vld [vmem:[%s952 + $0xf8] sm:$0xff]
        %v985 = vld [vmem:[%s952 + $0x100] sm:$0xff]
        %v986 = vld [vmem:[%s952 + $0x108] sm:$0xff]
        %v987 = vld [vmem:[%s952 + $0x110] sm:$0xff]
        %v988 = vld [vmem:[%s952 + $0x118] sm:$0x3f]
        %v989 = vrot.slane %v573, 2
        %v990 = vrot.slane %v574, 2
        %v991 = vrot.slane %v575, 2
        %v994 = vsel %vm613, %v991, 0
        %v997 = vsel %vm617, %v988, 0
        %999 = vmatprep.subr.mxu0 0.0
        %1000 = vmatpush1.msra.mxu0 %v968
        %1001 = vmatprep.subr.mxu0 0.0
        %1002 = vmatpush1.msra.mxu0 %v967
        %1003 = vmatprep.subr.mxu0 0.0
        %1004 = vmatpush1.msra.mxu0 %v966
        %1005 = vmatprep.subr.mxu0 0.0
        %1006 = vmatpush1.msra.mxu0 %v965
        %1007 = vmatprep.subr.mxu0 0.0
        %1008 = vmatpush1.msra.mxu0 %v964
        %1009 = vmatprep.subr.mxu0 0.0
        %1010 = vmatpush1.msra.mxu0 %v963
        %1011 = vmatprep.subr.mxu0 0.0
        %1012 = vmatpush1.msra.mxu0 %v962
        %1013 = vmatprep.subr.mxu0 0.0
        %1014 = vmatpush1.msra.mxu0 %v961
        %1015 = vmatprep.subr.mxu0 0.0
        %1016 = vmatpush1.msra.mxu0 %v960
        %1017 = vmatprep.subr.mxu0 0.0
        %1018 = vmatpush1.msra.mxu0 %v959
        %1019 = vmatprep.subr.mxu0 0.0
        %1020 = vmatpush1.msra.mxu0 %v958
        %1021 = vmatprep.subr.mxu0 0.0
        %1022 = vmatpush1.msra.mxu0 %v957
        %1023 = vmatprep.subr.mxu0 0.0
        %1024 = vmatpush1.msra.mxu0 %v956
        %1025 = vmatprep.subr.mxu0 0.0
        %1026 = vmatpush1.msra.mxu0 %v955
        %1027 = vmatprep.subr.mxu0 0.0
        %1028 = vmatpush1.msra.mxu0 %v954
        %1029 = vmatprep.subr.mxu0 0.0
        %1030 = vmatpush1.msra.mxu0 %v953
        %1031 = vmatprep.subr.mxu0 0.0
        %1032 = vmatpush2.msra.mxu0 %v984
        %1033 = vmatprep.subr.mxu0 0.0
        %1034 = vmatpush2.msra.mxu0 %v983
        %1035 = vmatprep.subr.mxu0 0.0
        %1036 = vmatpush2.msra.mxu0 %v982
        %1037 = vmatprep.subr.mxu0 0.0
        %1038 = vmatpush2.msra.mxu0 %v981
        %1039 = vmatprep.subr.mxu0 0.0
        %1040 = vmatpush2.msra.mxu0 %v980
        %1041 = vmatprep.subr.mxu0 0.0
        %1042 = vmatpush2.msra.mxu0 %v979
        %1043 = vmatprep.subr.mxu0 0.0
        %1044 = vmatpush2.msra.mxu0 %v978
        %1045 = vmatprep.subr.mxu0 0.0
        %1046 = vmatpush2.msra.mxu0 %v977
        %1047 = vmatprep.subr.mxu0 0.0
        %1048 = vmatpush2.msra.mxu0 %v976
        %1049 = vmatprep.subr.mxu0 0.0
        %1050 = vmatpush2.msra.mxu0 %v975
        %1051 = vmatprep.subr.mxu0 0.0
        %1052 = vmatpush2.msra.mxu0 %v974
        %1053 = vmatprep.subr.mxu0 0.0
        %1054 = vmatpush2.msra.mxu0 %v973
        %1055 = vmatprep.subr.mxu0 0.0
        %1056 = vmatpush2.msra.mxu0 %v972
        %1057 = vmatprep.subr.mxu0 0.0
        %1058 = vmatpush2.msra.mxu0 %v971
        %1059 = vmatprep.subr.mxu0 0.0
        %1060 = vmatpush2.msra.mxu0 %v970
        %1061 = vmatprep.subr.mxu0 0.0
        %1062 = vmatpush2.msra.mxu0 %v969
        %1063 = vmatprep.mubr.f32.mxu0 %v990
        %1064 = vmatmul.mubr.f32.gmra.mxu0 %v989
        %v1065 = vpop.f32.mrf.mxu0
        %v1066 = vadd.f32 0.0, %v1065
        %v1067 = vpop.f32.mrf.mxu0
        %1068 = vdwg.mxu0
        %1069 = vmatprep.subr.mxu0 0.0
        %1070 = vmatpush1.msra.mxu0 0.0
        %1071 = vmatprep.subr.mxu0 0.0
        %1072 = vmatpush1.msra.mxu0 0.0
        %1073 = vmatprep.subr.mxu0 0.0
        %1074 = vmatpush1.msra.mxu0 0.0
        %1075 = vmatprep.subr.mxu0 0.0
        %1076 = vmatpush1.msra.mxu0 0.0
        %1077 = vmatprep.subr.mxu0 0.0
        %1078 = vmatpush1.msra.mxu0 0.0
        %1079 = vmatprep.subr.mxu0 0.0
        %1080 = vmatpush1.msra.mxu0 0.0
        %1081 = vmatprep.subr.mxu0 0.0
        %1082 = vmatpush1.msra.mxu0 0.0
        %1083 = vmatprep.subr.mxu0 0.0
        %1084 = vmatpush1.msra.mxu0 0.0
        %1085 = vmatprep.subr.mxu0 0.0
        %1086 = vmatpush1.msra.mxu0 0.0
        %1087 = vmatprep.subr.mxu0 0.0
        %1088 = vmatpush1.msra.mxu0 0.0
        %1089 = vmatprep.subr.mxu0 0.0
        %1090 = vmatpush1.msra.mxu0 0.0
        %1091 = vmatprep.subr.mxu0 0.0
        %1092 = vmatpush1.msra.mxu0 0.0
        %1093 = vmatprep.subr.mxu0 0.0
        %1094 = vmatpush1.msra.mxu0 %v997
        %1095 = vmatprep.subr.mxu0 0.0
        %1096 = vmatpush1.msra.mxu0 %v987
        %1097 = vmatprep.subr.mxu0 0.0
        %1098 = vmatpush1.msra.mxu0 %v986
        %1099 = vmatprep.subr.mxu0 0.0
        %1100 = vmatpush1.msra.mxu0 %v985
        %1101 = vmatprep.subr.mxu0 0.0
        %1102 = vmatpush2.msra.mxu0 0.0
        %1103 = vmatprep.subr.mxu0 0.0
        %1104 = vmatpush2.msra.mxu0 0.0
        %1105 = vmatprep.subr.mxu0 0.0
        %1106 = vmatpush2.msra.mxu0 0.0
        %1107 = vmatprep.subr.mxu0 0.0
        %1108 = vmatpush2.msra.mxu0 0.0
        %1109 = vmatprep.subr.mxu0 0.0
        %1110 = vmatpush2.msra.mxu0 0.0
        %1111 = vmatprep.subr.mxu0 0.0
        %1112 = vmatpush2.msra.mxu0 0.0
        %1113 = vmatprep.subr.mxu0 0.0
        %1114 = vmatpush2.msra.mxu0 0.0
        %1115 = vmatprep.subr.mxu0 0.0
        %1116 = vmatpush2.msra.mxu0 0.0
        %1117 = vmatprep.subr.mxu0 0.0
        %1118 = vmatpush2.msra.mxu0 0.0
        %1119 = vmatprep.subr.mxu0 0.0
        %1120 = vmatpush2.msra.mxu0 0.0
        %1121 = vmatprep.subr.mxu0 0.0
        %1122 = vmatpush2.msra.mxu0 0.0
        %1123 = vmatprep.subr.mxu0 0.0
        %1124 = vmatpush2.msra.mxu0 0.0
        %1125 = vmatprep.subr.mxu0 0.0
        %1126 = vmatpush2.msra.mxu0 0.0
        %1127 = vmatprep.subr.mxu0 0.0
        %1128 = vmatpush2.msra.mxu0 0.0
        %1129 = vmatprep.subr.mxu0 0.0
        %1130 = vmatpush2.msra.mxu0 0.0
        %1131 = vmatprep.subr.mxu0 0.0
        %1132 = vmatpush2.msra.mxu0 0.0
        %1133 = vmatprep.mubr.f32.mxu0 0.0
        %1134 = vmatmul.mubr.f32.gmra.mxu0 %v994
        %v1135 = vpop.f32.mrf.mxu0
        %v1136 = vadd.f32 %v1066, %v1135
        %v1137 = vpop.f32.mrf.mxu0
        %1138 = vdwg.mxu0
        %v1139 = vadd.f32 %v951, %v1136
        %s1140 = scalar_lea.vmem %s3, 864
        %v1141 = vld [vmem:[%s1140] sm:$0xff]
        %v1142 = vld [vmem:[%s1140 + $0x8] sm:$0xff]
        %v1143 = vld [vmem:[%s1140 + $0x10] sm:$0xff]
        %v1144 = vld [vmem:[%s1140 + $0x18] sm:$0xff]
        %v1145 = vld [vmem:[%s1140 + $0x20] sm:$0xff]
        %v1146 = vld [vmem:[%s1140 + $0x28] sm:$0xff]
        %v1147 = vld [vmem:[%s1140 + $0x30] sm:$0xff]
        %v1148 = vld [vmem:[%s1140 + $0x38] sm:$0xff]
        %v1149 = vld [vmem:[%s1140 + $0x40] sm:$0xff]
        %v1150 = vld [vmem:[%s1140 + $0x48] sm:$0xff]
        %v1151 = vld [vmem:[%s1140 + $0x50] sm:$0xff]
        %v1152 = vld [vmem:[%s1140 + $0x58] sm:$0xff]
        %v1153 = vld [vmem:[%s1140 + $0x60] sm:$0xff]
        %v1154 = vld [vmem:[%s1140 + $0x68] sm:$0xff]
        %v1155 = vld [vmem:[%s1140 + $0x70] sm:$0xff]
        %v1156 = vld [vmem:[%s1140 + $0x78] sm:$0xff]
        %v1157 = vld [vmem:[%s1140 + $0x80] sm:$0xff]
        %v1158 = vld [vmem:[%s1140 + $0x88] sm:$0xff]
        %v1159 = vld [vmem:[%s1140 + $0x90] sm:$0xff]
        %v1160 = vld [vmem:[%s1140 + $0x98] sm:$0xff]
        %v1161 = vld [vmem:[%s1140 + $0xa0] sm:$0xff]
        %v1162 = vld [vmem:[%s1140 + $0xa8] sm:$0xff]
        %v1163 = vld [vmem:[%s1140 + $0xb0] sm:$0xff]
        %v1164 = vld [vmem:[%s1140 + $0xb8] sm:$0xff]
        %v1165 = vld [vmem:[%s1140 + $0xc0] sm:$0xff]
        %v1166 = vld [vmem:[%s1140 + $0xc8] sm:$0xff]
        %v1167 = vld [vmem:[%s1140 + $0xd0] sm:$0xff]
        %v1168 = vld [vmem:[%s1140 + $0xd8] sm:$0xff]
        %v1169 = vld [vmem:[%s1140 + $0xe0] sm:$0xff]
        %v1170 = vld [vmem:[%s1140 + $0xe8] sm:$0xff]
        %v1171 = vld [vmem:[%s1140 + $0xf0] sm:$0xff]
        %v1172 = vld [vmem:[%s1140 + $0xf8] sm:$0xff]
        %v1173 = vld [vmem:[%s1140 + $0x100] sm:$0xff]
        %v1174 = vld [vmem:[%s1140 + $0x108] sm:$0xff]
        %v1175 = vld [vmem:[%s1140 + $0x110] sm:$0xff]
        %v1176 = vld [vmem:[%s1140 + $0x118] sm:$0x3f]
        %v1177 = vrot.slane %v573, 3
        %v1178 = vrot.slane %v574, 3
        %v1179 = vrot.slane %v575, 3
        %v1182 = vsel %vm613, %v1179, 0
        %v1185 = vsel %vm617, %v1176, 0
        %1187 = vmatprep.subr.mxu0 0.0
        %1188 = vmatpush1.msra.mxu0 %v1156
        %1189 = vmatprep.subr.mxu0 0.0
        %1190 = vmatpush1.msra.mxu0 %v1155
        %1191 = vmatprep.subr.mxu0 0.0
        %1192 = vmatpush1.msra.mxu0 %v1154
        %1193 = vmatprep.subr.mxu0 0.0
        %1194 = vmatpush1.msra.mxu0 %v1153
        %1195 = vmatprep.subr.mxu0 0.0
        %1196 = vmatpush1.msra.mxu0 %v1152
        %1197 = vmatprep.subr.mxu0 0.0
        %1198 = vmatpush1.msra.mxu0 %v1151
        %1199 = vmatprep.subr.mxu0 0.0
        %1200 = vmatpush1.msra.mxu0 %v1150
        %1201 = vmatprep.subr.mxu0 0.0
        %1202 = vmatpush1.msra.mxu0 %v1149
        %1203 = vmatprep.subr.mxu0 0.0
        %1204 = vmatpush1.msra.mxu0 %v1148
        %1205 = vmatprep.subr.mxu0 0.0
        %1206 = vmatpush1.msra.mxu0 %v1147
        %1207 = vmatprep.subr.mxu0 0.0
        %1208 = vmatpush1.msra.mxu0 %v1146
        %1209 = vmatprep.subr.mxu0 0.0
        %1210 = vmatpush1.msra.mxu0 %v1145
        %1211 = vmatprep.subr.mxu0 0.0
        %1212 = vmatpush1.msra.mxu0 %v1144
        %1213 = vmatprep.subr.mxu0 0.0
        %1214 = vmatpush1.msra.mxu0 %v1143
        %1215 = vmatprep.subr.mxu0 0.0
        %1216 = vmatpush1.msra.mxu0 %v1142
        %1217 = vmatprep.subr.mxu0 0.0
        %1218 = vmatpush1.msra.mxu0 %v1141
        %1219 = vmatprep.subr.mxu0 0.0
        %1220 = vmatpush2.msra.mxu0 %v1172
        %1221 = vmatprep.subr.mxu0 0.0
        %1222 = vmatpush2.msra.mxu0 %v1171
        %1223 = vmatprep.subr.mxu0 0.0
        %1224 = vmatpush2.msra.mxu0 %v1170
        %1225 = vmatprep.subr.mxu0 0.0
        %1226 = vmatpush2.msra.mxu0 %v1169
        %1227 = vmatprep.subr.mxu0 0.0
        %1228 = vmatpush2.msra.mxu0 %v1168
        %1229 = vmatprep.subr.mxu0 0.0
        %1230 = vmatpush2.msra.mxu0 %v1167
        %1231 = vmatprep.subr.mxu0 0.0
        %1232 = vmatpush2.msra.mxu0 %v1166
        %1233 = vmatprep.subr.mxu0 0.0
        %1234 = vmatpush2.msra.mxu0 %v1165
        %1235 = vmatprep.subr.mxu0 0.0
        %1236 = vmatpush2.msra.mxu0 %v1164
        %1237 = vmatprep.subr.mxu0 0.0
        %1238 = vmatpush2.msra.mxu0 %v1163
        %1239 = vmatprep.subr.mxu0 0.0
        %1240 = vmatpush2.msra.mxu0 %v1162
        %1241 = vmatprep.subr.mxu0 0.0
        %1242 = vmatpush2.msra.mxu0 %v1161
        %1243 = vmatprep.subr.mxu0 0.0
        %1244 = vmatpush2.msra.mxu0 %v1160
        %1245 = vmatprep.subr.mxu0 0.0
        %1246 = vmatpush2.msra.mxu0 %v1159
        %1247 = vmatprep.subr.mxu0 0.0
        %1248 = vmatpush2.msra.mxu0 %v1158
        %1249 = vmatprep.subr.mxu0 0.0
        %1250 = vmatpush2.msra.mxu0 %v1157
        %1251 = vmatprep.mubr.f32.mxu0 %v1178
        %1252 = vmatmul.mubr.f32.gmra.mxu0 %v1177
        %v1253 = vpop.f32.mrf.mxu0
        %v1254 = vadd.f32 0.0, %v1253
        %v1255 = vpop.f32.mrf.mxu0
        %1256 = vdwg.mxu0
        %1257 = vmatprep.subr.mxu0 0.0
        %1258 = vmatpush1.msra.mxu0 0.0
        %1259 = vmatprep.subr.mxu0 0.0
        %1260 = vmatpush1.msra.mxu0 0.0
        %1261 = vmatprep.subr.mxu0 0.0
        %1262 = vmatpush1.msra.mxu0 0.0
        %1263 = vmatprep.subr.mxu0 0.0
        %1264 = vmatpush1.msra.mxu0 0.0
        %1265 = vmatprep.subr.mxu0 0.0
        %1266 = vmatpush1.msra.mxu0 0.0
        %1267 = vmatprep.subr.mxu0 0.0
        %1268 = vmatpush1.msra.mxu0 0.0
        %1269 = vmatprep.subr.mxu0 0.0
        %1270 = vmatpush1.msra.mxu0 0.0
        %1271 = vmatprep.subr.mxu0 0.0
        %1272 = vmatpush1.msra.mxu0 0.0
        %1273 = vmatprep.subr.mxu0 0.0
        %1274 = vmatpush1.msra.mxu0 0.0
        %1275 = vmatprep.subr.mxu0 0.0
        %1276 = vmatpush1.msra.mxu0 0.0
        %1277 = vmatprep.subr.mxu0 0.0
        %1278 = vmatpush1.msra.mxu0 0.0
        %1279 = vmatprep.subr.mxu0 0.0
        %1280 = vmatpush1.msra.mxu0 0.0
        %1281 = vmatprep.subr.mxu0 0.0
        %1282 = vmatpush1.msra.mxu0 %v1185
        %1283 = vmatprep.subr.mxu0 0.0
        %1284 = vmatpush1.msra.mxu0 %v1175
        %1285 = vmatprep.subr.mxu0 0.0
        %1286 = vmatpush1.msra.mxu0 %v1174
        %1287 = vmatprep.subr.mxu0 0.0
        %1288 = vmatpush1.msra.mxu0 %v1173
        %1289 = vmatprep.subr.mxu0 0.0
        %1290 = vmatpush2.msra.mxu0 0.0
        %1291 = vmatprep.subr.mxu0 0.0
        %1292 = vmatpush2.msra.mxu0 0.0
        %1293 = vmatprep.subr.mxu0 0.0
        %1294 = vmatpush2.msra.mxu0 0.0
        %1295 = vmatprep.subr.mxu0 0.0
        %1296 = vmatpush2.msra.mxu0 0.0
        %1297 = vmatprep.subr.mxu0 0.0
        %1298 = vmatpush2.msra.mxu0 0.0
        %1299 = vmatprep.subr.mxu0 0.0
        %1300 = vmatpush2.msra.mxu0 0.0
        %1301 = vmatprep.subr.mxu0 0.0
        %1302 = vmatpush2.msra.mxu0 0.0
        %1303 = vmatprep.subr.mxu0 0.0
        %1304 = vmatpush2.msra.mxu0 0.0
        %1305 = vmatprep.subr.mxu0 0.0
        %1306 = vmatpush2.msra.mxu0 0.0
        %1307 = vmatprep.subr.mxu0 0.0
        %1308 = vmatpush2.msra.mxu0 0.0
        %1309 = vmatprep.subr.mxu0 0.0
        %1310 = vmatpush2.msra.mxu0 0.0
        %1311 = vmatprep.subr.mxu0 0.0
        %1312 = vmatpush2.msra.mxu0 0.0
        %1313 = vmatprep.subr.mxu0 0.0
        %1314 = vmatpush2.msra.mxu0 0.0
        %1315 = vmatprep.subr.mxu0 0.0
        %1316 = vmatpush2.msra.mxu0 0.0
        %1317 = vmatprep.subr.mxu0 0.0
        %1318 = vmatpush2.msra.mxu0 0.0
        %1319 = vmatprep.subr.mxu0 0.0
        %1320 = vmatpush2.msra.mxu0 0.0
        %1321 = vmatprep.mubr.f32.mxu0 0.0
        %1322 = vmatmul.mubr.f32.gmra.mxu0 %v1182
        %v1323 = vpop.f32.mrf.mxu0
        %v1324 = vadd.f32 %v1254, %v1323
        %v1325 = vpop.f32.mrf.mxu0
        %1326 = vdwg.mxu0
        %v1327 = vadd.f32 %v1139, %v1324
        %s1328 = scalar_lea.vmem %s3, 1152
        %v1329 = vld [vmem:[%s1328] sm:$0xff]
        %v1330 = vld [vmem:[%s1328 + $0x8] sm:$0xff]
        %v1331 = vld [vmem:[%s1328 + $0x10] sm:$0xff]
        %v1332 = vld [vmem:[%s1328 + $0x18] sm:$0xff]
        %v1333 = vld [vmem:[%s1328 + $0x20] sm:$0xff]
        %v1334 = vld [vmem:[%s1328 + $0x28] sm:$0xff]
        %v1335 = vld [vmem:[%s1328 + $0x30] sm:$0xff]
        %v1336 = vld [vmem:[%s1328 + $0x38] sm:$0xff]
        %v1337 = vld [vmem:[%s1328 + $0x40] sm:$0xff]
        %v1338 = vld [vmem:[%s1328 + $0x48] sm:$0xff]
        %v1339 = vld [vmem:[%s1328 + $0x50] sm:$0xff]
        %v1340 = vld [vmem:[%s1328 + $0x58] sm:$0xff]
        %v1341 = vld [vmem:[%s1328 + $0x60] sm:$0xff]
        %v1342 = vld [vmem:[%s1328 + $0x68] sm:$0xff]
        %v1343 = vld [vmem:[%s1328 + $0x70] sm:$0xff]
        %v1344 = vld [vmem:[%s1328 + $0x78] sm:$0xff]
        %v1345 = vld [vmem:[%s1328 + $0x80] sm:$0xff]
        %v1346 = vld [vmem:[%s1328 + $0x88] sm:$0xff]
        %v1347 = vld [vmem:[%s1328 + $0x90] sm:$0xff]
        %v1348 = vld [vmem:[%s1328 + $0x98] sm:$0xff]
        %v1349 = vld [vmem:[%s1328 + $0xa0] sm:$0xff]
        %v1350 = vld [vmem:[%s1328 + $0xa8] sm:$0xff]
        %v1351 = vld [vmem:[%s1328 + $0xb0] sm:$0xff]
        %v1352 = vld [vmem:[%s1328 + $0xb8] sm:$0xff]
        %v1353 = vld [vmem:[%s1328 + $0xc0] sm:$0xff]
        %v1354 = vld [vmem:[%s1328 + $0xc8] sm:$0xff]
        %v1355 = vld [vmem:[%s1328 + $0xd0] sm:$0xff]
        %v1356 = vld [vmem:[%s1328 + $0xd8] sm:$0xff]
        %v1357 = vld [vmem:[%s1328 + $0xe0] sm:$0xff]
        %v1358 = vld [vmem:[%s1328 + $0xe8] sm:$0xff]
        %v1359 = vld [vmem:[%s1328 + $0xf0] sm:$0xff]
        %v1360 = vld [vmem:[%s1328 + $0xf8] sm:$0xff]
        %v1361 = vld [vmem:[%s1328 + $0x100] sm:$0xff]
        %v1362 = vld [vmem:[%s1328 + $0x108] sm:$0xff]
        %v1363 = vld [vmem:[%s1328 + $0x110] sm:$0xff]
        %v1364 = vld [vmem:[%s1328 + $0x118] sm:$0x3f]
        %v1365 = vrot.slane %v573, 4
        %v1366 = vrot.slane %v574, 4
        %v1367 = vrot.slane %v575, 4
        %v1370 = vsel %vm613, %v1367, 0
        %v1373 = vsel %vm617, %v1364, 0
        %1375 = vmatprep.subr.mxu0 0.0
        %1376 = vmatpush1.msra.mxu0 %v1344
        %1377 = vmatprep.subr.mxu0 0.0
        %1378 = vmatpush1.msra.mxu0 %v1343
        %1379 = vmatprep.subr.mxu0 0.0
        %1380 = vmatpush1.msra.mxu0 %v1342
        %1381 = vmatprep.subr.mxu0 0.0
        %1382 = vmatpush1.msra.mxu0 %v1341
        %1383 = vmatprep.subr.mxu0 0.0
        %1384 = vmatpush1.msra.mxu0 %v1340
        %1385 = vmatprep.subr.mxu0 0.0
        %1386 = vmatpush1.msra.mxu0 %v1339
        %1387 = vmatprep.subr.mxu0 0.0
        %1388 = vmatpush1.msra.mxu0 %v1338
        %1389 = vmatprep.subr.mxu0 0.0
        %1390 = vmatpush1.msra.mxu0 %v1337
        %1391 = vmatprep.subr.mxu0 0.0
        %1392 = vmatpush1.msra.mxu0 %v1336
        %1393 = vmatprep.subr.mxu0 0.0
        %1394 = vmatpush1.msra.mxu0 %v1335
        %1395 = vmatprep.subr.mxu0 0.0
        %1396 = vmatpush1.msra.mxu0 %v1334
        %1397 = vmatprep.subr.mxu0 0.0
        %1398 = vmatpush1.msra.mxu0 %v1333
        %1399 = vmatprep.subr.mxu0 0.0
        %1400 = vmatpush1.msra.mxu0 %v1332
        %1401 = vmatprep.subr.mxu0 0.0
        %1402 = vmatpush1.msra.mxu0 %v1331
        %1403 = vmatprep.subr.mxu0 0.0
        %1404 = vmatpush1.msra.mxu0 %v1330
        %1405 = vmatprep.subr.mxu0 0.0
        %1406 = vmatpush1.msra.mxu0 %v1329
        %1407 = vmatprep.subr.mxu0 0.0
        %1408 = vmatpush2.msra.mxu0 %v1360
        %1409 = vmatprep.subr.mxu0 0.0
        %1410 = vmatpush2.msra.mxu0 %v1359
        %1411 = vmatprep.subr.mxu0 0.0
        %1412 = vmatpush2.msra.mxu0 %v1358
        %1413 = vmatprep.subr.mxu0 0.0
        %1414 = vmatpush2.msra.mxu0 %v1357
        %1415 = vmatprep.subr.mxu0 0.0
        %1416 = vmatpush2.msra.mxu0 %v1356
        %1417 = vmatprep.subr.mxu0 0.0
        %1418 = vmatpush2.msra.mxu0 %v1355
        %1419 = vmatprep.subr.mxu0 0.0
        %1420 = vmatpush2.msra.mxu0 %v1354
        %1421 = vmatprep.subr.mxu0 0.0
        %1422 = vmatpush2.msra.mxu0 %v1353
        %1423 = vmatprep.subr.mxu0 0.0
        %1424 = vmatpush2.msra.mxu0 %v1352
        %1425 = vmatprep.subr.mxu0 0.0
        %1426 = vmatpush2.msra.mxu0 %v1351
        %1427 = vmatprep.subr.mxu0 0.0
        %1428 = vmatpush2.msra.mxu0 %v1350
        %1429 = vmatprep.subr.mxu0 0.0
        %1430 = vmatpush2.msra.mxu0 %v1349
        %1431 = vmatprep.subr.mxu0 0.0
        %1432 = vmatpush2.msra.mxu0 %v1348
        %1433 = vmatprep.subr.mxu0 0.0
        %1434 = vmatpush2.msra.mxu0 %v1347
        %1435 = vmatprep.subr.mxu0 0.0
        %1436 = vmatpush2.msra.mxu0 %v1346
        %1437 = vmatprep.subr.mxu0 0.0
        %1438 = vmatpush2.msra.mxu0 %v1345
        %1439 = vmatprep.mubr.f32.mxu0 %v1366
        %1440 = vmatmul.mubr.f32.gmra.mxu0 %v1365
        %v1441 = vpop.f32.mrf.mxu0
        %v1442 = vadd.f32 0.0, %v1441
        %v1443 = vpop.f32.mrf.mxu0
        %1444 = vdwg.mxu0
        %1445 = vmatprep.subr.mxu0 0.0
        %1446 = vmatpush1.msra.mxu0 0.0
        %1447 = vmatprep.subr.mxu0 0.0
        %1448 = vmatpush1.msra.mxu0 0.0
        %1449 = vmatprep.subr.mxu0 0.0
        %1450 = vmatpush1.msra.mxu0 0.0
        %1451 = vmatprep.subr.mxu0 0.0
        %1452 = vmatpush1.msra.mxu0 0.0
        %1453 = vmatprep.subr.mxu0 0.0
        %1454 = vmatpush1.msra.mxu0 0.0
        %1455 = vmatprep.subr.mxu0 0.0
        %1456 = vmatpush1.msra.mxu0 0.0
        %1457 = vmatprep.subr.mxu0 0.0
        %1458 = vmatpush1.msra.mxu0 0.0
        %1459 = vmatprep.subr.mxu0 0.0
        %1460 = vmatpush1.msra.mxu0 0.0
        %1461 = vmatprep.subr.mxu0 0.0
        %1462 = vmatpush1.msra.mxu0 0.0
        %1463 = vmatprep.subr.mxu0 0.0
        %1464 = vmatpush1.msra.mxu0 0.0
        %1465 = vmatprep.subr.mxu0 0.0
        %1466 = vmatpush1.msra.mxu0 0.0
        %1467 = vmatprep.subr.mxu0 0.0
        %1468 = vmatpush1.msra.mxu0 0.0
        %1469 = vmatprep.subr.mxu0 0.0
        %1470 = vmatpush1.msra.mxu0 %v1373
        %1471 = vmatprep.subr.mxu0 0.0
        %1472 = vmatpush1.msra.mxu0 %v1363
        %1473 = vmatprep.subr.mxu0 0.0
        %1474 = vmatpush1.msra.mxu0 %v1362
        %1475 = vmatprep.subr.mxu0 0.0
        %1476 = vmatpush1.msra.mxu0 %v1361
        %1477 = vmatprep.subr.mxu0 0.0
        %1478 = vmatpush2.msra.mxu0 0.0
        %1479 = vmatprep.subr.mxu0 0.0
        %1480 = vmatpush2.msra.mxu0 0.0
        %1481 = vmatprep.subr.mxu0 0.0
        %1482 = vmatpush2.msra.mxu0 0.0
        %1483 = vmatprep.subr.mxu0 0.0
        %1484 = vmatpush2.msra.mxu0 0.0
        %1485 = vmatprep.subr.mxu0 0.0
        %1486 = vmatpush2.msra.mxu0 0.0
        %1487 = vmatprep.subr.mxu0 0.0
        %1488 = vmatpush2.msra.mxu0 0.0
        %1489 = vmatprep.subr.mxu0 0.0
        %1490 = vmatpush2.msra.mxu0 0.0
        %1491 = vmatprep.subr.mxu0 0.0
        %1492 = vmatpush2.msra.mxu0 0.0
        %1493 = vmatprep.subr.mxu0 0.0
        %1494 = vmatpush2.msra.mxu0 0.0
        %1495 = vmatprep.subr.mxu0 0.0
        %1496 = vmatpush2.msra.mxu0 0.0
        %1497 = vmatprep.subr.mxu0 0.0
        %1498 = vmatpush2.msra.mxu0 0.0
        %1499 = vmatprep.subr.mxu0 0.0
        %1500 = vmatpush2.msra.mxu0 0.0
        %1501 = vmatprep.subr.mxu0 0.0
        %1502 = vmatpush2.msra.mxu0 0.0
        %1503 = vmatprep.subr.mxu0 0.0
        %1504 = vmatpush2.msra.mxu0 0.0
        %1505 = vmatprep.subr.mxu0 0.0
        %1506 = vmatpush2.msra.mxu0 0.0
        %1507 = vmatprep.subr.mxu0 0.0
        %1508 = vmatpush2.msra.mxu0 0.0
        %1509 = vmatprep.mubr.f32.mxu0 0.0
        %1510 = vmatmul.mubr.f32.gmra.mxu0 %v1370
        %v1511 = vpop.f32.mrf.mxu0
        %v1512 = vadd.f32 %v1442, %v1511
        %v1513 = vpop.f32.mrf.mxu0
        %1514 = vdwg.mxu0
        %v1515 = vadd.f32 %v1327, %v1512
        %s1516 = scalar_lea.vmem %s3, 1440
        %v1517 = vld [vmem:[%s1516] sm:$0xff]
        %v1518 = vld [vmem:[%s1516 + $0x8] sm:$0xff]
        %v1519 = vld [vmem:[%s1516 + $0x10] sm:$0xff]
        %v1520 = vld [vmem:[%s1516 + $0x18] sm:$0xff]
        %v1521 = vld [vmem:[%s1516 + $0x20] sm:$0xff]
        %v1522 = vld [vmem:[%s1516 + $0x28] sm:$0xff]
        %v1523 = vld [vmem:[%s1516 + $0x30] sm:$0xff]
        %v1524 = vld [vmem:[%s1516 + $0x38] sm:$0xff]
        %v1525 = vld [vmem:[%s1516 + $0x40] sm:$0xff]
        %v1526 = vld [vmem:[%s1516 + $0x48] sm:$0xff]
        %v1527 = vld [vmem:[%s1516 + $0x50] sm:$0xff]
        %v1528 = vld [vmem:[%s1516 + $0x58] sm:$0xff]
        %v1529 = vld [vmem:[%s1516 + $0x60] sm:$0xff]
        %v1530 = vld [vmem:[%s1516 + $0x68] sm:$0xff]
        %v1531 = vld [vmem:[%s1516 + $0x70] sm:$0xff]
        %v1532 = vld [vmem:[%s1516 + $0x78] sm:$0xff]
        %v1533 = vld [vmem:[%s1516 + $0x80] sm:$0xff]
        %v1534 = vld [vmem:[%s1516 + $0x88] sm:$0xff]
        %v1535 = vld [vmem:[%s1516 + $0x90] sm:$0xff]
        %v1536 = vld [vmem:[%s1516 + $0x98] sm:$0xff]
        %v1537 = vld [vmem:[%s1516 + $0xa0] sm:$0xff]
        %v1538 = vld [vmem:[%s1516 + $0xa8] sm:$0xff]
        %v1539 = vld [vmem:[%s1516 + $0xb0] sm:$0xff]
        %v1540 = vld [vmem:[%s1516 + $0xb8] sm:$0xff]
        %v1541 = vld [vmem:[%s1516 + $0xc0] sm:$0xff]
        %v1542 = vld [vmem:[%s1516 + $0xc8] sm:$0xff]
        %v1543 = vld [vmem:[%s1516 + $0xd0] sm:$0xff]
        %v1544 = vld [vmem:[%s1516 + $0xd8] sm:$0xff]
        %v1545 = vld [vmem:[%s1516 + $0xe0] sm:$0xff]
        %v1546 = vld [vmem:[%s1516 + $0xe8] sm:$0xff]
        %v1547 = vld [vmem:[%s1516 + $0xf0] sm:$0xff]
        %v1548 = vld [vmem:[%s1516 + $0xf8] sm:$0xff]
        %v1549 = vld [vmem:[%s1516 + $0x100] sm:$0xff]
        %v1550 = vld [vmem:[%s1516 + $0x108] sm:$0xff]
        %v1551 = vld [vmem:[%s1516 + $0x110] sm:$0xff]
        %v1552 = vld [vmem:[%s1516 + $0x118] sm:$0x3f]
        %v1553 = vrot.slane %v573, 5
        %v1554 = vrot.slane %v574, 5
        %v1555 = vrot.slane %v575, 5
        %v1558 = vsel %vm613, %v1555, 0
        %v1561 = vsel %vm617, %v1552, 0
        %1563 = vmatprep.subr.mxu0 0.0
        %1564 = vmatpush1.msra.mxu0 %v1532
        %1565 = vmatprep.subr.mxu0 0.0
        %1566 = vmatpush1.msra.mxu0 %v1531
        %1567 = vmatprep.subr.mxu0 0.0
        %1568 = vmatpush1.msra.mxu0 %v1530
        %1569 = vmatprep.subr.mxu0 0.0
        %1570 = vmatpush1.msra.mxu0 %v1529
        %1571 = vmatprep.subr.mxu0 0.0
        %1572 = vmatpush1.msra.mxu0 %v1528
        %1573 = vmatprep.subr.mxu0 0.0
        %1574 = vmatpush1.msra.mxu0 %v1527
        %1575 = vmatprep.subr.mxu0 0.0
        %1576 = vmatpush1.msra.mxu0 %v1526
        %1577 = vmatprep.subr.mxu0 0.0
        %1578 = vmatpush1.msra.mxu0 %v1525
        %1579 = vmatprep.subr.mxu0 0.0
        %1580 = vmatpush1.msra.mxu0 %v1524
        %1581 = vmatprep.subr.mxu0 0.0
        %1582 = vmatpush1.msra.mxu0 %v1523
        %1583 = vmatprep.subr.mxu0 0.0
        %1584 = vmatpush1.msra.mxu0 %v1522
        %1585 = vmatprep.subr.mxu0 0.0
        %1586 = vmatpush1.msra.mxu0 %v1521
        %1587 = vmatprep.subr.mxu0 0.0
        %1588 = vmatpush1.msra.mxu0 %v1520
        %1589 = vmatprep.subr.mxu0 0.0
        %1590 = vmatpush1.msra.mxu0 %v1519
        %1591 = vmatprep.subr.mxu0 0.0
        %1592 = vmatpush1.msra.mxu0 %v1518
        %1593 = vmatprep.subr.mxu0 0.0
        %1594 = vmatpush1.msra.mxu0 %v1517
        %1595 = vmatprep.subr.mxu0 0.0
        %1596 = vmatpush2.msra.mxu0 %v1548
        %1597 = vmatprep.subr.mxu0 0.0
        %1598 = vmatpush2.msra.mxu0 %v1547
        %1599 = vmatprep.subr.mxu0 0.0
        %1600 = vmatpush2.msra.mxu0 %v1546
        %1601 = vmatprep.subr.mxu0 0.0
        %1602 = vmatpush2.msra.mxu0 %v1545
        %1603 = vmatprep.subr.mxu0 0.0
        %1604 = vmatpush2.msra.mxu0 %v1544
        %1605 = vmatprep.subr.mxu0 0.0
        %1606 = vmatpush2.msra.mxu0 %v1543
        %1607 = vmatprep.subr.mxu0 0.0
        %1608 = vmatpush2.msra.mxu0 %v1542
        %1609 = vmatprep.subr.mxu0 0.0
        %1610 = vmatpush2.msra.mxu0 %v1541
        %1611 = vmatprep.subr.mxu0 0.0
        %1612 = vmatpush2.msra.mxu0 %v1540
        %1613 = vmatprep.subr.mxu0 0.0
        %1614 = vmatpush2.msra.mxu0 %v1539
        %1615 = vmatprep.subr.mxu0 0.0
        %1616 = vmatpush2.msra.mxu0 %v1538
        %1617 = vmatprep.subr.mxu0 0.0
        %1618 = vmatpush2.msra.mxu0 %v1537
        %1619 = vmatprep.subr.mxu0 0.0
        %1620 = vmatpush2.msra.mxu0 %v1536
        %1621 = vmatprep.subr.mxu0 0.0
        %1622 = vmatpush2.msra.mxu0 %v1535
        %1623 = vmatprep.subr.mxu0 0.0
        %1624 = vmatpush2.msra.mxu0 %v1534
        %1625 = vmatprep.subr.mxu0 0.0
        %1626 = vmatpush2.msra.mxu0 %v1533
        %1627 = vmatprep.mubr.f32.mxu0 %v1554
        %1628 = vmatmul.mubr.f32.gmra.mxu0 %v1553
        %v1629 = vpop.f32.mrf.mxu0
        %v1630 = vadd.f32 0.0, %v1629
        %v1631 = vpop.f32.mrf.mxu0
        %1632 = vdwg.mxu0
        %1633 = vmatprep.subr.mxu0 0.0
        %1634 = vmatpush1.msra.mxu0 0.0
        %1635 = vmatprep.subr.mxu0 0.0
        %1636 = vmatpush1.msra.mxu0 0.0
        %1637 = vmatprep.subr.mxu0 0.0
        %1638 = vmatpush1.msra.mxu0 0.0
        %1639 = vmatprep.subr.mxu0 0.0
        %1640 = vmatpush1.msra.mxu0 0.0
        %1641 = vmatprep.subr.mxu0 0.0
        %1642 = vmatpush1.msra.mxu0 0.0
        %1643 = vmatprep.subr.mxu0 0.0
        %1644 = vmatpush1.msra.mxu0 0.0
        %1645 = vmatprep.subr.mxu0 0.0
        %1646 = vmatpush1.msra.mxu0 0.0
        %1647 = vmatprep.subr.mxu0 0.0
        %1648 = vmatpush1.msra.mxu0 0.0
        %1649 = vmatprep.subr.mxu0 0.0
        %1650 = vmatpush1.msra.mxu0 0.0
        %1651 = vmatprep.subr.mxu0 0.0
        %1652 = vmatpush1.msra.mxu0 0.0
        %1653 = vmatprep.subr.mxu0 0.0
        %1654 = vmatpush1.msra.mxu0 0.0
        %1655 = vmatprep.subr.mxu0 0.0
        %1656 = vmatpush1.msra.mxu0 0.0
        %1657 = vmatprep.subr.mxu0 0.0
        %1658 = vmatpush1.msra.mxu0 %v1561
        %1659 = vmatprep.subr.mxu0 0.0
        %1660 = vmatpush1.msra.mxu0 %v1551
        %1661 = vmatprep.subr.mxu0 0.0
        %1662 = vmatpush1.msra.mxu0 %v1550
        %1663 = vmatprep.subr.mxu0 0.0
        %1664 = vmatpush1.msra.mxu0 %v1549
        %1665 = vmatprep.subr.mxu0 0.0
        %1666 = vmatpush2.msra.mxu0 0.0
        %1667 = vmatprep.subr.mxu0 0.0
        %1668 = vmatpush2.msra.mxu0 0.0
        %1669 = vmatprep.subr.mxu0 0.0
        %1670 = vmatpush2.msra.mxu0 0.0
        %1671 = vmatprep.subr.mxu0 0.0
        %1672 = vmatpush2.msra.mxu0 0.0
        %1673 = vmatprep.subr.mxu0 0.0
        %1674 = vmatpush2.msra.mxu0 0.0
        %1675 = vmatprep.subr.mxu0 0.0
        %1676 = vmatpush2.msra.mxu0 0.0
        %1677 = vmatprep.subr.mxu0 0.0
        %1678 = vmatpush2.msra.mxu0 0.0
        %1679 = vmatprep.subr.mxu0 0.0
        %1680 = vmatpush2.msra.mxu0 0.0
        %1681 = vmatprep.subr.mxu0 0.0
        %1682 = vmatpush2.msra.mxu0 0.0
        %1683 = vmatprep.subr.mxu0 0.0
        %1684 = vmatpush2.msra.mxu0 0.0
        %1685 = vmatprep.subr.mxu0 0.0
        %1686 = vmatpush2.msra.mxu0 0.0
        %1687 = vmatprep.subr.mxu0 0.0
        %1688 = vmatpush2.msra.mxu0 0.0
        %1689 = vmatprep.subr.mxu0 0.0
        %1690 = vmatpush2.msra.mxu0 0.0
        %1691 = vmatprep.subr.mxu0 0.0
        %1692 = vmatpush2.msra.mxu0 0.0
        %1693 = vmatprep.subr.mxu0 0.0
        %1694 = vmatpush2.msra.mxu0 0.0
        %1695 = vmatprep.subr.mxu0 0.0
        %1696 = vmatpush2.msra.mxu0 0.0
        %1697 = vmatprep.mubr.f32.mxu0 0.0
        %1698 = vmatmul.mubr.f32.gmra.mxu0 %v1558
        %v1699 = vpop.f32.mrf.mxu0
        %v1700 = vadd.f32 %v1630, %v1699
        %v1701 = vpop.f32.mrf.mxu0
        %1702 = vdwg.mxu0
        %v1703 = vadd.f32 %v1515, %v1700
        %s1704 = scalar_lea.vmem %s3, 1728
        %v1705 = vld [vmem:[%s1704] sm:$0xff]
        %v1706 = vld [vmem:[%s1704 + $0x8] sm:$0xff]
        %v1707 = vld [vmem:[%s1704 + $0x10] sm:$0xff]
        %v1708 = vld [vmem:[%s1704 + $0x18] sm:$0xff]
        %v1709 = vld [vmem:[%s1704 + $0x20] sm:$0xff]
        %v1710 = vld [vmem:[%s1704 + $0x28] sm:$0xff]
        %v1711 = vld [vmem:[%s1704 + $0x30] sm:$0xff]
        %v1712 = vld [vmem:[%s1704 + $0x38] sm:$0xff]
        %v1713 = vld [vmem:[%s1704 + $0x40] sm:$0xff]
        %v1714 = vld [vmem:[%s1704 + $0x48] sm:$0xff]
        %v1715 = vld [vmem:[%s1704 + $0x50] sm:$0xff]
        %v1716 = vld [vmem:[%s1704 + $0x58] sm:$0xff]
        %v1717 = vld [vmem:[%s1704 + $0x60] sm:$0xff]
        %v1718 = vld [vmem:[%s1704 + $0x68] sm:$0xff]
        %v1719 = vld [vmem:[%s1704 + $0x70] sm:$0xff]
        %v1720 = vld [vmem:[%s1704 + $0x78] sm:$0xff]
        %v1721 = vld [vmem:[%s1704 + $0x80] sm:$0xff]
        %v1722 = vld [vmem:[%s1704 + $0x88] sm:$0xff]
        %v1723 = vld [vmem:[%s1704 + $0x90] sm:$0xff]
        %v1724 = vld [vmem:[%s1704 + $0x98] sm:$0xff]
        %v1725 = vld [vmem:[%s1704 + $0xa0] sm:$0xff]
        %v1726 = vld [vmem:[%s1704 + $0xa8] sm:$0xff]
        %v1727 = vld [vmem:[%s1704 + $0xb0] sm:$0xff]
        %v1728 = vld [vmem:[%s1704 + $0xb8] sm:$0xff]
        %v1729 = vld [vmem:[%s1704 + $0xc0] sm:$0xff]
        %v1730 = vld [vmem:[%s1704 + $0xc8] sm:$0xff]
        %v1731 = vld [vmem:[%s1704 + $0xd0] sm:$0xff]
        %v1732 = vld [vmem:[%s1704 + $0xd8] sm:$0xff]
        %v1733 = vld [vmem:[%s1704 + $0xe0] sm:$0xff]
        %v1734 = vld [vmem:[%s1704 + $0xe8] sm:$0xff]
        %v1735 = vld [vmem:[%s1704 + $0xf0] sm:$0xff]
        %v1736 = vld [vmem:[%s1704 + $0xf8] sm:$0xff]
        %v1737 = vld [vmem:[%s1704 + $0x100] sm:$0xff]
        %v1738 = vld [vmem:[%s1704 + $0x108] sm:$0xff]
        %v1739 = vld [vmem:[%s1704 + $0x110] sm:$0xff]
        %v1740 = vld [vmem:[%s1704 + $0x118] sm:$0x3f]
        %v1741 = vrot.slane %v573, 6
        %v1742 = vrot.slane %v574, 6
        %v1743 = vrot.slane %v575, 6
        %v1746 = vsel %vm613, %v1743, 0
        %v1749 = vsel %vm617, %v1740, 0
        %1751 = vmatprep.subr.mxu0 0.0
        %1752 = vmatpush1.msra.mxu0 %v1720
        %1753 = vmatprep.subr.mxu0 0.0
        %1754 = vmatpush1.msra.mxu0 %v1719
        %1755 = vmatprep.subr.mxu0 0.0
        %1756 = vmatpush1.msra.mxu0 %v1718
        %1757 = vmatprep.subr.mxu0 0.0
        %1758 = vmatpush1.msra.mxu0 %v1717
        %1759 = vmatprep.subr.mxu0 0.0
        %1760 = vmatpush1.msra.mxu0 %v1716
        %1761 = vmatprep.subr.mxu0 0.0
        %1762 = vmatpush1.msra.mxu0 %v1715
        %1763 = vmatprep.subr.mxu0 0.0
        %1764 = vmatpush1.msra.mxu0 %v1714
        %1765 = vmatprep.subr.mxu0 0.0
        %1766 = vmatpush1.msra.mxu0 %v1713
        %1767 = vmatprep.subr.mxu0 0.0
        %1768 = vmatpush1.msra.mxu0 %v1712
        %1769 = vmatprep.subr.mxu0 0.0
        %1770 = vmatpush1.msra.mxu0 %v1711
        %1771 = vmatprep.subr.mxu0 0.0
        %1772 = vmatpush1.msra.mxu0 %v1710
        %1773 = vmatprep.subr.mxu0 0.0
        %1774 = vmatpush1.msra.mxu0 %v1709
        %1775 = vmatprep.subr.mxu0 0.0
        %1776 = vmatpush1.msra.mxu0 %v1708
        %1777 = vmatprep.subr.mxu0 0.0
        %1778 = vmatpush1.msra.mxu0 %v1707
        %1779 = vmatprep.subr.mxu0 0.0
        %1780 = vmatpush1.msra.mxu0 %v1706
        %1781 = vmatprep.subr.mxu0 0.0
        %1782 = vmatpush1.msra.mxu0 %v1705
        %1783 = vmatprep.subr.mxu0 0.0
        %1784 = vmatpush2.msra.mxu0 %v1736
        %1785 = vmatprep.subr.mxu0 0.0
        %1786 = vmatpush2.msra.mxu0 %v1735
        %1787 = vmatprep.subr.mxu0 0.0
        %1788 = vmatpush2.msra.mxu0 %v1734
        %1789 = vmatprep.subr.mxu0 0.0
        %1790 = vmatpush2.msra.mxu0 %v1733
        %1791 = vmatprep.subr.mxu0 0.0
        %1792 = vmatpush2.msra.mxu0 %v1732
        %1793 = vmatprep.subr.mxu0 0.0
        %1794 = vmatpush2.msra.mxu0 %v1731
        %1795 = vmatprep.subr.mxu0 0.0
        %1796 = vmatpush2.msra.mxu0 %v1730
        %1797 = vmatprep.subr.mxu0 0.0
        %1798 = vmatpush2.msra.mxu0 %v1729
        %1799 = vmatprep.subr.mxu0 0.0
        %1800 = vmatpush2.msra.mxu0 %v1728
        %1801 = vmatprep.subr.mxu0 0.0
        %1802 = vmatpush2.msra.mxu0 %v1727
        %1803 = vmatprep.subr.mxu0 0.0
        %1804 = vmatpush2.msra.mxu0 %v1726
        %1805 = vmatprep.subr.mxu0 0.0
        %1806 = vmatpush2.msra.mxu0 %v1725
        %1807 = vmatprep.subr.mxu0 0.0
        %1808 = vmatpush2.msra.mxu0 %v1724
        %1809 = vmatprep.subr.mxu0 0.0
        %1810 = vmatpush2.msra.mxu0 %v1723
        %1811 = vmatprep.subr.mxu0 0.0
        %1812 = vmatpush2.msra.mxu0 %v1722
        %1813 = vmatprep.subr.mxu0 0.0
        %1814 = vmatpush2.msra.mxu0 %v1721
        %1815 = vmatprep.mubr.f32.mxu0 %v1742
        %1816 = vmatmul.mubr.f32.gmra.mxu0 %v1741
        %v1817 = vpop.f32.mrf.mxu0
        %v1818 = vadd.f32 0.0, %v1817
        %v1819 = vpop.f32.mrf.mxu0
        %1820 = vdwg.mxu0
        %1821 = vmatprep.subr.mxu0 0.0
        %1822 = vmatpush1.msra.mxu0 0.0
        %1823 = vmatprep.subr.mxu0 0.0
        %1824 = vmatpush1.msra.mxu0 0.0
        %1825 = vmatprep.subr.mxu0 0.0
        %1826 = vmatpush1.msra.mxu0 0.0
        %1827 = vmatprep.subr.mxu0 0.0
        %1828 = vmatpush1.msra.mxu0 0.0
        %1829 = vmatprep.subr.mxu0 0.0
        %1830 = vmatpush1.msra.mxu0 0.0
        %1831 = vmatprep.subr.mxu0 0.0
        %1832 = vmatpush1.msra.mxu0 0.0
        %1833 = vmatprep.subr.mxu0 0.0
        %1834 = vmatpush1.msra.mxu0 0.0
        %1835 = vmatprep.subr.mxu0 0.0
        %1836 = vmatpush1.msra.mxu0 0.0
        %1837 = vmatprep.subr.mxu0 0.0
        %1838 = vmatpush1.msra.mxu0 0.0
        %1839 = vmatprep.subr.mxu0 0.0
        %1840 = vmatpush1.msra.mxu0 0.0
        %1841 = vmatprep.subr.mxu0 0.0
        %1842 = vmatpush1.msra.mxu0 0.0
        %1843 = vmatprep.subr.mxu0 0.0
        %1844 = vmatpush1.msra.mxu0 0.0
        %1845 = vmatprep.subr.mxu0 0.0
        %1846 = vmatpush1.msra.mxu0 %v1749
        %1847 = vmatprep.subr.mxu0 0.0
        %1848 = vmatpush1.msra.mxu0 %v1739
        %1849 = vmatprep.subr.mxu0 0.0
        %1850 = vmatpush1.msra.mxu0 %v1738
        %1851 = vmatprep.subr.mxu0 0.0
        %1852 = vmatpush1.msra.mxu0 %v1737
        %1853 = vmatprep.subr.mxu0 0.0
        %1854 = vmatpush2.msra.mxu0 0.0
        %1855 = vmatprep.subr.mxu0 0.0
        %1856 = vmatpush2.msra.mxu0 0.0
        %1857 = vmatprep.subr.mxu0 0.0
        %1858 = vmatpush2.msra.mxu0 0.0
        %1859 = vmatprep.subr.mxu0 0.0
        %1860 = vmatpush2.msra.mxu0 0.0
        %1861 = vmatprep.subr.mxu0 0.0
        %1862 = vmatpush2.msra.mxu0 0.0
        %1863 = vmatprep.subr.mxu0 0.0
        %1864 = vmatpush2.msra.mxu0 0.0
        %1865 = vmatprep.subr.mxu0 0.0
        %1866 = vmatpush2.msra.mxu0 0.0
        %1867 = vmatprep.subr.mxu0 0.0
        %1868 = vmatpush2.msra.mxu0 0.0
        %1869 = vmatprep.subr.mxu0 0.0
        %1870 = vmatpush2.msra.mxu0 0.0
        %1871 = vmatprep.subr.mxu0 0.0
        %1872 = vmatpush2.msra.mxu0 0.0
        %1873 = vmatprep.subr.mxu0 0.0
        %1874 = vmatpush2.msra.mxu0 0.0
        %1875 = vmatprep.subr.mxu0 0.0
        %1876 = vmatpush2.msra.mxu0 0.0
        %1877 = vmatprep.subr.mxu0 0.0
        %1878 = vmatpush2.msra.mxu0 0.0
        %1879 = vmatprep.subr.mxu0 0.0
        %1880 = vmatpush2.msra.mxu0 0.0
        %1881 = vmatprep.subr.mxu0 0.0
        %1882 = vmatpush2.msra.mxu0 0.0
        %1883 = vmatprep.subr.mxu0 0.0
        %1884 = vmatpush2.msra.mxu0 0.0
        %1885 = vmatprep.mubr.f32.mxu0 0.0
        %1886 = vmatmul.mubr.f32.gmra.mxu0 %v1746
        %v1887 = vpop.f32.mrf.mxu0
        %v1888 = vadd.f32 %v1818, %v1887
        %v1889 = vpop.f32.mrf.mxu0
        %1890 = vdwg.mxu0
        %v1891 = vadd.f32 %v1703, %v1888
        %s1892 = scalar_lea.vmem %s3, 2016
        %v1893 = vld [vmem:[%s1892] sm:$0xff]
        %v1894 = vld [vmem:[%s1892 + $0x8] sm:$0xff]
        %v1895 = vld [vmem:[%s1892 + $0x10] sm:$0xff]
        %v1896 = vld [vmem:[%s1892 + $0x18] sm:$0xff]
        %v1897 = vld [vmem:[%s1892 + $0x20] sm:$0xff]
        %v1898 = vld [vmem:[%s1892 + $0x28] sm:$0xff]
        %v1899 = vld [vmem:[%s1892 + $0x30] sm:$0xff]
        %v1900 = vld [vmem:[%s1892 + $0x38] sm:$0xff]
        %v1901 = vld [vmem:[%s1892 + $0x40] sm:$0xff]
        %v1902 = vld [vmem:[%s1892 + $0x48] sm:$0xff]
        %v1903 = vld [vmem:[%s1892 + $0x50] sm:$0xff]
        %v1904 = vld [vmem:[%s1892 + $0x58] sm:$0xff]
        %v1905 = vld [vmem:[%s1892 + $0x60] sm:$0xff]
        %v1906 = vld [vmem:[%s1892 + $0x68] sm:$0xff]
        %v1907 = vld [vmem:[%s1892 + $0x70] sm:$0xff]
        %v1908 = vld [vmem:[%s1892 + $0x78] sm:$0xff]
        %v1909 = vld [vmem:[%s1892 + $0x80] sm:$0xff]
        %v1910 = vld [vmem:[%s1892 + $0x88] sm:$0xff]
        %v1911 = vld [vmem:[%s1892 + $0x90] sm:$0xff]
        %v1912 = vld [vmem:[%s1892 + $0x98] sm:$0xff]
        %v1913 = vld [vmem:[%s1892 + $0xa0] sm:$0xff]
        %v1914 = vld [vmem:[%s1892 + $0xa8] sm:$0xff]
        %v1915 = vld [vmem:[%s1892 + $0xb0] sm:$0xff]
        %v1916 = vld [vmem:[%s1892 + $0xb8] sm:$0xff]
        %v1917 = vld [vmem:[%s1892 + $0xc0] sm:$0xff]
        %v1918 = vld [vmem:[%s1892 + $0xc8] sm:$0xff]
        %v1919 = vld [vmem:[%s1892 + $0xd0] sm:$0xff]
        %v1920 = vld [vmem:[%s1892 + $0xd8] sm:$0xff]
        %v1921 = vld [vmem:[%s1892 + $0xe0] sm:$0xff]
        %v1922 = vld [vmem:[%s1892 + $0xe8] sm:$0xff]
        %v1923 = vld [vmem:[%s1892 + $0xf0] sm:$0xff]
        %v1924 = vld [vmem:[%s1892 + $0xf8] sm:$0xff]
        %v1925 = vld [vmem:[%s1892 + $0x100] sm:$0xff]
        %v1926 = vld [vmem:[%s1892 + $0x108] sm:$0xff]
        %v1927 = vld [vmem:[%s1892 + $0x110] sm:$0xff]
        %v1928 = vld [vmem:[%s1892 + $0x118] sm:$0x3f]
        %v1929 = vrot.slane %v573, 7
        %v1930 = vrot.slane %v574, 7
        %v1931 = vrot.slane %v575, 7
        %v1934 = vsel %vm613, %v1931, 0
        %v1937 = vsel %vm617, %v1928, 0
        %1939 = vmatprep.subr.mxu0 0.0
        %1940 = vmatpush1.msra.mxu0 %v1908
        %1941 = vmatprep.subr.mxu0 0.0
        %1942 = vmatpush1.msra.mxu0 %v1907
        %1943 = vmatprep.subr.mxu0 0.0
        %1944 = vmatpush1.msra.mxu0 %v1906
        %1945 = vmatprep.subr.mxu0 0.0
        %1946 = vmatpush1.msra.mxu0 %v1905
        %1947 = vmatprep.subr.mxu0 0.0
        %1948 = vmatpush1.msra.mxu0 %v1904
        %1949 = vmatprep.subr.mxu0 0.0
        %1950 = vmatpush1.msra.mxu0 %v1903
        %1951 = vmatprep.subr.mxu0 0.0
        %1952 = vmatpush1.msra.mxu0 %v1902
        %1953 = vmatprep.subr.mxu0 0.0
        %1954 = vmatpush1.msra.mxu0 %v1901
        %1955 = vmatprep.subr.mxu0 0.0
        %1956 = vmatpush1.msra.mxu0 %v1900
        %1957 = vmatprep.subr.mxu0 0.0
        %1958 = vmatpush1.msra.mxu0 %v1899
        %1959 = vmatprep.subr.mxu0 0.0
        %1960 = vmatpush1.msra.mxu0 %v1898
        %1961 = vmatprep.subr.mxu0 0.0
        %1962 = vmatpush1.msra.mxu0 %v1897
        %1963 = vmatprep.subr.mxu0 0.0
        %1964 = vmatpush1.msra.mxu0 %v1896
        %1965 = vmatprep.subr.mxu0 0.0
        %1966 = vmatpush1.msra.mxu0 %v1895
        %1967 = vmatprep.subr.mxu0 0.0
        %1968 = vmatpush1.msra.mxu0 %v1894
        %1969 = vmatprep.subr.mxu0 0.0
        %1970 = vmatpush1.msra.mxu0 %v1893
        %1971 = vmatprep.subr.mxu0 0.0
        %1972 = vmatpush2.msra.mxu0 %v1924
        %1973 = vmatprep.subr.mxu0 0.0
        %1974 = vmatpush2.msra.mxu0 %v1923
        %1975 = vmatprep.subr.mxu0 0.0
        %1976 = vmatpush2.msra.mxu0 %v1922
        %1977 = vmatprep.subr.mxu0 0.0
        %1978 = vmatpush2.msra.mxu0 %v1921
        %1979 = vmatprep.subr.mxu0 0.0
        %1980 = vmatpush2.msra.mxu0 %v1920
        %1981 = vmatprep.subr.mxu0 0.0
        %1982 = vmatpush2.msra.mxu0 %v1919
        %1983 = vmatprep.subr.mxu0 0.0
        %1984 = vmatpush2.msra.mxu0 %v1918
        %1985 = vmatprep.subr.mxu0 0.0
        %1986 = vmatpush2.msra.mxu0 %v1917
        %1987 = vmatprep.subr.mxu0 0.0
        %1988 = vmatpush2.msra.mxu0 %v1916
        %1989 = vmatprep.subr.mxu0 0.0
        %1990 = vmatpush2.msra.mxu0 %v1915
        %1991 = vmatprep.subr.mxu0 0.0
        %1992 = vmatpush2.msra.mxu0 %v1914
        %1993 = vmatprep.subr.mxu0 0.0
        %1994 = vmatpush2.msra.mxu0 %v1913
        %1995 = vmatprep.subr.mxu0 0.0
        %1996 = vmatpush2.msra.mxu0 %v1912
        %1997 = vmatprep.subr.mxu0 0.0
        %1998 = vmatpush2.msra.mxu0 %v1911
        %1999 = vmatprep.subr.mxu0 0.0
        %2000 = vmatpush2.msra.mxu0 %v1910
        %2001 = vmatprep.subr.mxu0 0.0
        %2002 = vmatpush2.msra.mxu0 %v1909
        %2003 = vmatprep.mubr.f32.mxu0 %v1930
        %2004 = vmatmul.mubr.f32.gmra.mxu0 %v1929
        %v2005 = vpop.f32.mrf.mxu0
        %v2006 = vadd.f32 0.0, %v2005
        %v2007 = vpop.f32.mrf.mxu0
        %2008 = vdwg.mxu0
        %2009 = vmatprep.subr.mxu0 0.0
        %2010 = vmatpush1.msra.mxu0 0.0
        %2011 = vmatprep.subr.mxu0 0.0
        %2012 = vmatpush1.msra.mxu0 0.0
        %2013 = vmatprep.subr.mxu0 0.0
        %2014 = vmatpush1.msra.mxu0 0.0
        %2015 = vmatprep.subr.mxu0 0.0
        %2016 = vmatpush1.msra.mxu0 0.0
        %2017 = vmatprep.subr.mxu0 0.0
        %2018 = vmatpush1.msra.mxu0 0.0
        %2019 = vmatprep.subr.mxu0 0.0
        %2020 = vmatpush1.msra.mxu0 0.0
        %2021 = vmatprep.subr.mxu0 0.0
        %2022 = vmatpush1.msra.mxu0 0.0
        %2023 = vmatprep.subr.mxu0 0.0
        %2024 = vmatpush1.msra.mxu0 0.0
        %2025 = vmatprep.subr.mxu0 0.0
        %2026 = vmatpush1.msra.mxu0 0.0
        %2027 = vmatprep.subr.mxu0 0.0
        %2028 = vmatpush1.msra.mxu0 0.0
        %2029 = vmatprep.subr.mxu0 0.0
        %2030 = vmatpush1.msra.mxu0 0.0
        %2031 = vmatprep.subr.mxu0 0.0
        %2032 = vmatpush1.msra.mxu0 0.0
        %2033 = vmatprep.subr.mxu0 0.0
        %2034 = vmatpush1.msra.mxu0 %v1937
        %2035 = vmatprep.subr.mxu0 0.0
        %2036 = vmatpush1.msra.mxu0 %v1927
        %2037 = vmatprep.subr.mxu0 0.0
        %2038 = vmatpush1.msra.mxu0 %v1926
        %2039 = vmatprep.subr.mxu0 0.0
        %2040 = vmatpush1.msra.mxu0 %v1925
        %2041 = vmatprep.subr.mxu0 0.0
        %2042 = vmatpush2.msra.mxu0 0.0
        %2043 = vmatprep.subr.mxu0 0.0
        %2044 = vmatpush2.msra.mxu0 0.0
        %2045 = vmatprep.subr.mxu0 0.0
        %2046 = vmatpush2.msra.mxu0 0.0
        %2047 = vmatprep.subr.mxu0 0.0
        %2048 = vmatpush2.msra.mxu0 0.0
        %2049 = vmatprep.subr.mxu0 0.0
        %2050 = vmatpush2.msra.mxu0 0.0
        %2051 = vmatprep.subr.mxu0 0.0
        %2052 = vmatpush2.msra.mxu0 0.0
        %2053 = vmatprep.subr.mxu0 0.0
        %2054 = vmatpush2.msra.mxu0 0.0
        %2055 = vmatprep.subr.mxu0 0.0
        %2056 = vmatpush2.msra.mxu0 0.0
        %2057 = vmatprep.subr.mxu0 0.0
        %2058 = vmatpush2.msra.mxu0 0.0
        %2059 = vmatprep.subr.mxu0 0.0
        %2060 = vmatpush2.msra.mxu0 0.0
        %2061 = vmatprep.subr.mxu0 0.0
        %2062 = vmatpush2.msra.mxu0 0.0
        %2063 = vmatprep.subr.mxu0 0.0
        %2064 = vmatpush2.msra.mxu0 0.0
        %2065 = vmatprep.subr.mxu0 0.0
        %2066 = vmatpush2.msra.mxu0 0.0
        %2067 = vmatprep.subr.mxu0 0.0
        %2068 = vmatpush2.msra.mxu0 0.0
        %2069 = vmatprep.subr.mxu0 0.0
        %2070 = vmatpush2.msra.mxu0 0.0
        %2071 = vmatprep.subr.mxu0 0.0
        %2072 = vmatpush2.msra.mxu0 0.0
        %2073 = vmatprep.mubr.f32.mxu0 0.0
        %2074 = vmatmul.mubr.f32.gmra.mxu0 %v1934
        %v2075 = vpop.f32.mrf.mxu0
        %v2076 = vadd.f32 %v2006, %v2075
        %v2077 = vpop.f32.mrf.mxu0
        %2078 = vdwg.mxu0
        %v2079 = vadd.f32 %v1891, %v2076
        %vm2080 = vcmask 73728
        %v2081 = vsel %vm2080, %v2079, -inf
        %2082 = vmax.xlane.f32.xlu0 %v2081
        %v2083 = vpop.xlane.xlu0 %2082
        %v2084 = vsub.f32 %v2079, %v2083
        %v2085 = vmul.f32 %v2084, 1.442695
        %v2086 = vpow.pop %v2085
        %v2087 = vsel %vm2080, %v2086, 0.0
        %2088 = vadd.xlane.f32.xlu0 %v2087
        %v2089 = vpop.xlane.xlu0 %2088
        %v2090 = vrcp.pop %v2089
        %v2091 = vmul.f32 %v2086, %v2090
        %2092 = vst.msk [vmem:[%s216] sm:$0x1] %vm2080, %v2091
        %s2093 = sand.u32 %s137, 1
        %s2094 = scalar_lea.sflag [#allocation4], %s2093
        %s2095 = sand.u32 %s137, 1
        %s2096 = scalar_lea.vmem [#allocation3], %s2095
        // Predicated region
        $region41: #{tpu_custom_call.1} parent=39 // pred_check
          %p2097 = pneg %p147
        $region42: #{tpu_custom_call.1} parent=39 // pred_check_branch
          %2099 = sbr.rel (%p2097) target = $region44
        $region43: #{tpu_custom_call.1} parent=39 // pred_region
          %s2101 = ssub.s32 16, 16
          %2102 = vsyncadd %s2094, %s2101
          %s2103 = smul.addr %s19, 16
          %s2104 = scalar_lea.hbm %s5, %s2103
          %s2106 = sshll.u32 %s2096, 4
          %s2107 = int_to_ptr.vmem [resolvable:$true] %s2106
          %2109 = dma.vmem_to_hbm [thread:$0]  %s2107, 16, %s2104, %s2094
        $region44: #{tpu_custom_call.1} parent=39 // pred_fallthru
          _
      $region40: #{tpu_custom_call.1} parent=5 // pred_fallthru
        _
      %p2110 = scmp.le.s32.totalorder 2, %s14
      // Predicated region
      $region45: #{tpu_custom_call.1} parent=5 // pred_check
        %p2111 = pneg %p2110
      $region46: #{tpu_custom_call.1} parent=5 // pred_check_branch
        %2113 = sbr.rel (%p2111) target = $region48
      $region47: #{tpu_custom_call.1} parent=5 // pred_region
        %s2114 = ssub.s32 %s14, 2
        // Predicated region
        $region49: #{tpu_custom_call.1} parent=47 // pred_check
          %p2115 = pneg %p153
        $region50: #{tpu_custom_call.1} parent=47 // pred_check_branch
          %2117 = sbr.rel (%p2115) target = $region52
        $region51: #{tpu_custom_call.1} parent=47 // pred_region
          %s2118 = sand.u32 %s138, 1
          %s2119 = scalar_lea.sflag [#allocation4], %s2118
          %s2120 = sand.u32 %s138, 1
          %s2121 = scalar_lea.vmem [#allocation3], %s2120
          %2122 = dma.done %s2119, 16
        $region52: #{tpu_custom_call.1} parent=47 // pred_fallthru
          _
      $region48: #{tpu_custom_call.1} parent=5 // pred_fallthru
        _
    $region6: #{tpu_custom_call.1} parent=1 // loop_footer
      %s18 = sadd.s32 1, %s14
    $region7: #{tpu_custom_call.1} parent=1 // loop_footer_branch
      %13 = sbr.rel target = $region3
    $region8: #{tpu_custom_call.1} parent=1 // loop_exit
      _
    %2123 = vsyncpa [#allocation4], 1
    %s2124 = scalar_lea.sflag [#allocation4], 1
    %2125 = vsyncpa %s2124, 1

</llo_original>
